<compile_context>
chip_gen: v5e
topology: v5e:2x2
jax: 0.10.0
libtpu: 0.0.40
codegen_flags: <defaults>
</compile_context>

<pallas_src>
import functools
import math

import numpy as np
import jax
import jax.numpy as jnp
from jax import lax
from jax.experimental import pallas as pl
from jax.experimental.pallas import tpu as pltpu


# ----------------------------------------------------------------------------
# helpers
# ----------------------------------------------------------------------------
def _out_size(size, k, s, p, d):
    return (size + 2 * p - d * (k - 1) - 1) // s + 1


def _round_up(x, m):
    return ((x + m - 1) // m) * m


def _vmem_limit_bytes():
    """Per-generation VMEM budget: ~48 MiB on v7x (64 MiB physical),
    ~56 MiB on v5e/v6e (128 MiB physical)."""
    cap = None
    try:
        cap = int(pltpu.get_tpu_info().vmem_capacity_bytes)
    except Exception:
        cap = None
    if not cap or cap <= 0:
        cap = 64 * 2**20                       # conservative: v7x per-core VMEM
    return int(min(0.75 * cap, 56 * 2**20))


def _tile_vmem_bytes(TH, OW, C, O, K, Hp, Wp, in_bytes=2, out_bytes=4):
    """Rough VMEM footprint of one grid step (incl. (sublane,lane) padding and
    double-buffering of pipelined operands)."""
    S = TH * OW
    img = Hp * _round_up(Wp, 16) * _round_up(C, 128) * in_bytes   # resident image
    wgt = _round_up(O, 16) * _round_up(K, 128) * in_bytes
    bia = _round_up(O, 8) * 128 * 4
    out = _round_up(O, 8) * _round_up(S, 128) * out_bytes
    xs = _round_up(S, 16) * _round_up(K, 128) * in_bytes          # im2col scratch
    return 2 * (img + wgt + bia + out) + xs


def _pick_row_tile(N, OH, OW, C, O, K, Hp, Wp, budget):
    """Largest output-row tile TH (a divisor of OH) such that
      * TH*OW is a multiple of 128 (unmasked lane-dense stores) when possible,
      * the per-step working set fits `budget`,
      * the grid keeps >= 4 steps so both v7x TensorCores get work,
    preferring 256-lane-aligned tiles (v6e/v7x MXU) and capping TH*OW at 2048."""
    divisors = [t for t in range(1, OH + 1) if OH % t == 0]
    aligned = [t for t in divisors if (t * OW) % 128 == 0]
    # Fallback to masked partial stores only if no divisor is lane-aligned.
    pool = aligned if aligned else divisors
    fits = [t for t in pool if _tile_vmem_bytes(t, OW, C, O, K, Hp, Wp) <= budget]
    if not fits:
        # TODO(synk): switch to halo'd row blocks instead of whole-image blocks
        # when even the smallest tile exceeds the budget.
        fits = [pool[0]]
    par_ok = [t for t in fits if N * (OH // t) >= 4]
    cands = par_ok if par_ok else fits

    def score(t):
        s = t * OW
        return (s <= 2048, s % 256 == 0, s)

    return max(cands, key=score)


def fold_depth_sep_weights(w_dw, w_pw, hidden_channels,
                           compute_dtype=jnp.bfloat16):
    """Fold the pointwise 1x1 weight into the per-tap depthwise weights.

    w_dw: (C*M, 1, KH, KW)  depthwise Conv2d weight (groups=C, M=hidden)
    w_pw: (O, C*M) or (O, C*M, 1, 1)  pointwise 1x1 Conv2d weight
    returns (O, KH*KW*C) in compute_dtype; column index = (kh*KW+kw)*C + c,
    matching the in-kernel im2col column order.  Precompute once and reuse.
    """
    CM, _, KH, KW = w_dw.shape
    M = hidden_channels
    C = CM // M
    w_pw2 = w_pw.reshape(w_pw.shape[0], CM)
    O = w_pw2.shape[0]
    wd = w_dw.astype(jnp.float32).reshape(C, M, KH * KW)
    wp = w_pw2.astype(jnp.float32).reshape(O, C, M)
    wf = jnp.einsum('cmk,ocm->okc', wd, wp)            # (O, KH*KW, C)
    return wf.reshape(O, KH * KW * C).astype(compute_dtype)


# ----------------------------------------------------------------------------
# Pallas kernel
# ----------------------------------------------------------------------------
def _dwsep_conv_kernel(x_ref, w_ref, b_ref, o_ref, xs_ref, *,
                       TH, OW, C, KH, KW, sh, sw, dh, dw):
    """Fused depthwise-separable conv; one (batch, output-row-tile) grid step.

    x_ref : (1, Hp, Wp, C)      compute-dtype zero-padded image (channels-last)
    w_ref : (O, KH*KW*C)        fused (depthwise x pointwise) weights
    b_ref : (O, 1)              f32 bias
    o_ref : (1, O, TH*OW)       output tile (spatial flattened on lanes)
    xs_ref: (TH*OW, KH*KW*C)    VMEM im2col scratch (overwritten every step)
    """
    i = pl.program_id(1)
    row0 = pl.multiple_of(i * (TH * sh), TH * sh)
    S = TH * OW

    # --- im2col: gather the KH*KW taps once into the scratch ---------------
    for kk in range(KH * KW):
        kh, kw = divmod(kk, KW)
        if sh == 1:
            rows = pl.ds(row0 + kh * dh, TH)
        else:  # TODO(synk): strided rows path untested by the demo config
            rows = pl.ds(row0 + kh * dh, TH, stride=sh)
        if sw == 1:
            cols = pl.ds(kw * dw, OW)
        else:  # TODO(synk): strided cols path untested by the demo config
            cols = pl.ds(kw * dw, OW, stride=sw)
        piece = x_ref[0, rows, cols, :]                  # (TH, OW, C)
        xs_ref[:, pl.ds(kk * C, C)] = piece.reshape(S, C)

    # --- single MXU pass: (O, K) x (S, K)^T -> (O, S), f32 accumulate ------
    nt_dims = (((1,), (1,)), ((), ()))
    out = lax.dot_general(w_ref[...], xs_ref[...], nt_dims,
                          preferred_element_type=jnp.float32)
    o_ref[0] = (out + b_ref[...]).astype(o_ref.dtype)    # bias folded at store


# ----------------------------------------------------------------------------
# wrappers (forward of _DepthSepConvNd, rank=2)
# ----------------------------------------------------------------------------
def depth_sep_conv2d_fused(x_nchw, w_fused, bias, *, kernel_size, stride,
                           padding, dilation, compute_dtype=jnp.bfloat16,
                           out_dtype=jnp.float32):
    """y = bias + pointwise_1x1(depthwise(x)) using pre-folded weights.

    x_nchw : (N, C, H, W)
    w_fused: (O, KH*KW*C)   from fold_depth_sep_weights (precompute once)
    bias   : (O,) or None
    """
    N, C, H, W = x_nchw.shape
    KH, KW = kernel_size
    O, K = w_fused.shape
    assert K == KH * KW * C, (K, KH, KW, C)
    sh, sw = stride
    ph, pw_ = padding
    dh, dw_ = dilation
    OH = _out_size(H, KH, sh, ph, dh)
    OW = _out_size(W, KW, sw, pw_, dw_)
    assert OH > 0 and OW > 0

    # Thin spatial zero-pad + channels-last + compute-dtype cast: one small XLA
    # fusion; no inflated (im2col) intermediate is materialized in HBM.
    x = jnp.transpose(x_nchw, (0, 2, 3, 1)).astype(compute_dtype)
    x_pad = jnp.pad(x, ((0, 0), (ph, ph), (pw_, pw_), (0, 0)))
    Hp, Wp = H + 2 * ph, W + 2 * pw_

    if bias is None:
        bias = jnp.zeros((O,), jnp.float32)
    b_col = bias.reshape(O, 1).astype(jnp.float32)

    vmem_limit = _vmem_limit_bytes()
    TH = _pick_row_tile(N, OH, OW, C, O, K, Hp, Wp, budget=int(0.8 * vmem_limit))
    grid = (N, OH // TH)

    kernel = functools.partial(_dwsep_conv_kernel, TH=TH, OW=OW, C=C,
                               KH=KH, KW=KW, sh=sh, sw=sw, dh=dh, dw=dw_)

    out_flat = pl.pallas_call(
        kernel,
        out_shape=jax.ShapeDtypeStruct((N, O, OH * OW), out_dtype),
        grid_spec=pltpu.PrefetchScalarGridSpec(
            num_scalar_prefetch=0,
            grid=grid,
            in_specs=[
                # Whole padded image per batch element; constant block across
                # the row-tile axis so it is fetched once per image and reused.
                # TODO(synk): halo'd row blocks / packed small-C layout for
                # images whose padded slab exceeds the VMEM budget.
                pl.BlockSpec((1, Hp, Wp, C), lambda n, i: (n, 0, 0, 0)),
                pl.BlockSpec((O, K), lambda n, i: (0, 0)),
                pl.BlockSpec((O, 1), lambda n, i: (0, 0)),
            ],
            out_specs=pl.BlockSpec((1, O, TH * OW), lambda n, i: (n, 0, i)),
            scratch_shapes=[pltpu.VMEM((TH * OW, K), compute_dtype)],
        ),
        compiler_params=pltpu.CompilerParams(
            dimension_semantics=("parallel", "parallel"),
            vmem_limit_bytes=vmem_limit),
    )(x_pad, w_fused.astype(compute_dtype), b_col)

    # Free reshape (no transpose, no HBM round trip): (N, O, OH*OW) -> NCHW.
    return out_flat.reshape(N, O, OH, OW)


def depth_sep_conv2d(x_nchw, w_dw, w_pw, bias, *, stride, padding, dilation,
                     hidden_channels, compute_dtype=jnp.bfloat16,
                     out_dtype=jnp.float32):
    """Convenience wrapper taking the raw module weights.  Prefer precomputing
    fold_depth_sep_weights once and calling depth_sep_conv2d_fused (jitted)."""
    KH, KW = w_dw.shape[-2], w_dw.shape[-1]
    w_fused = fold_depth_sep_weights(w_dw, w_pw, hidden_channels, compute_dtype)
    return depth_sep_conv2d_fused(x_nchw, w_fused, bias,
                                  kernel_size=(KH, KW), stride=stride,
                                  padding=padding, dilation=dilation,
                                  compute_dtype=compute_dtype,
                                  out_dtype=out_dtype)


# ----------------------------------------------------------------------------
# references (NumPy, float64)
# ----------------------------------------------------------------------------
def _f64(a):
    return np.asarray(jnp.asarray(a, jnp.float32), dtype=np.float64)


def _reference_forward(x, w_dw, w_pw, bias, stride, padding, dilation,
                       hidden_channels):
    """Definition-level: depthwise Conv2d(groups=C) -> 1x1 pointwise -> +bias."""
    x, w_dw, w_pw, bias = _f64(x), _f64(w_dw), _f64(w_pw), _f64(bias)
    N, C, H, W = x.shape
    CM, _, KH, KW = w_dw.shape
    M = hidden_channels
    O = w_pw.shape[0]
    sh, sw = stride
    ph, pw_ = padding
    dh, dw_ = dilation
    OH = _out_size(H, KH, sh, ph, dh)
    OW = _out_size(W, KW, sw, pw_, dw_)
    xp = np.zeros((N, C, H + 2 * ph, W + 2 * pw_))
    xp[:, :, ph:ph + H, pw_:pw_ + W] = x
    wd = w_dw.reshape(C, M, KH, KW)
    hid = np.zeros((N, C, M, OH, OW))
    for kh in range(KH):
        for kw in range(KW):
            xs = xp[:, :, kh * dh: kh * dh + sh * OH: sh,
                          kw * dw_: kw * dw_ + sw * OW: sw]        # (N,C,OH,OW)
            hid += xs[:, :, None, :, :] * wd[None, :, :, kh, kw, None, None]
    hid = hid.reshape(N, CM, OH, OW)
    out = np.einsum('nchw,oc->nohw', hid, w_pw.reshape(O, CM))
    return out + bias[None, :, None, None]


def _reference_fused(x, w_fused, bias, kernel_size, stride, padding, dilation):
    """Same math the kernel performs, with the given (already folded) weights
    in (O, KH*KW*C) layout."""
    x, wf, bias = _f64(x), _f64(w_fused), _f64(bias)
    N, C, H, W = x.shape
    KH, KW = kernel_size
    O = wf.shape[0]
    sh, sw = stride
    ph, pw_ = padding
    dh, dw_ = dilation
    OH = _out_size(H, KH, sh, ph, dh)
    OW = _out_size(W, KW, sw, pw_, dw_)
    xp = np.zeros((N, C, H + 2 * ph, W + 2 * pw_))
    xp[:, :, ph:ph + H, pw_:pw_ + W] = x
    out = np.zeros((N, O, OH, OW)) + bias[None, :, None, None]
    for kk in range(KH * KW):
        kh, kw = divmod(kk, KW)
        xs = xp[:, :, kh * dh: kh * dh + sh * OH: sh,
                      kw * dw_: kw * dw_ + sw * OW: sw]            # (N,C,OH,OW)
        out += np.einsum('nchw,oc->nohw', xs, wf[:, kk * C:(kk + 1) * C])
    return out


# ----------------------------------------------------------------------------
# demo / self-check
# ----------------------------------------------------------------------------
if __name__ == "__main__":
    # Module config (rank=2), small and deterministic.
    in_channels, out_channels, hidden_channels = 4, 8, 2
    kernel_size = (3, 3)
    stride = (1, 1)
    padding = (1, 1)
    dilation = (1, 1)
    N, H, W = 2, 16, 16

    key = jax.random.PRNGKey(0)
    kx, kd, kp, kb = jax.random.split(key, 4)
    x = jax.random.normal(kx, (N, in_channels, H, W), jnp.float32)

    CM = in_channels * hidden_channels
    # depthwise Conv2d weight (groups=C): (C*M, 1, KH, KW), kaiming-uniform bound
    bd = 1.0 / math.sqrt(1 * kernel_size[0] * kernel_size[1])
    w_dw = jax.random.uniform(kd, (CM, 1, kernel_size[0], kernel_size[1]),
                              jnp.float32, -bd, bd)
    # pointwise 1x1 Conv2d weight: (O, C*M)
    bp = 1.0 / math.sqrt(CM)
    w_pw = jax.random.uniform(kp, (out_channels, CM), jnp.float32, -bp, bp)
    # bias with the module's 'uniform' initializer (fan_in = C * prod(kernel))
    bb = 1.0 / math.sqrt(in_channels * kernel_size[0] * kernel_size[1])
    bias = jax.random.uniform(kb, (out_channels,), jnp.float32, -bb, bb)

    # Fold the pointwise weight into the depthwise taps ONCE (not per call),
    # and jit the fused forward so the pad/cast fuse and nothing is re-folded
    # or re-uploaded every step.
    w_fused = jax.block_until_ready(
        fold_depth_sep_weights(w_dw, w_pw, hidden_channels))
    fwd = jax.jit(functools.partial(
        depth_sep_conv2d_fused, kernel_size=kernel_size, stride=stride,
        padding=padding, dilation=dilation))

    out = jax.block_until_ready(fwd(x, w_fused, bias))
    out_np = np.asarray(out)

    OH = _out_size(H, kernel_size[0], stride[0], padding[0], dilation[0])
    OW = _out_size(W, kernel_size[1], stride[1], padding[1], dilation[1])
    assert out_np.shape == (N, out_channels, OH, OW), out_np.shape

    # (1) Tight check of the exact kernel math: same bf16-rounded operands the
    #     wrapper feeds to the kernel, f64 reference -> only f32-accumulation
    #     error remains.
    x16 = x.astype(jnp.bfloat16)
    ref_fused = _reference_fused(x16, w_fused, bias, kernel_size,
                                 stride, padding, dilation)
    np.testing.assert_allclose(out_np, ref_fused, rtol=1e-4, atol=1e-4)

    # (2) Definition-level check (depthwise groups=C conv -> 1x1 pointwise ->
    #     bias) in f64; tolerance covers bf16 rounding of the operands.
    ref = _reference_forward(x, w_dw, w_pw, bias, stride, padding, dilation,
                             hidden_channels)
    np.testing.assert_allclose(out_np, ref, rtol=2e-2, atol=2e-2)

    print("KERNEL_OK")
</pallas_src>

<mosaic_0001>
module attributes {stable_mosaic.version = 11 : i64} {
  func.func @_dwsep_conv_kernel(%arg0: i32, %arg1: i32, %arg2: memref<1x18x18x4xbf16, #tpu.memory_space<vmem>>, %arg3: memref<8x36xbf16, #tpu.memory_space<vmem>>, %arg4: memref<8x1xf32, #tpu.memory_space<vmem>>, %arg5: memref<1x8x128xf32, #tpu.memory_space<vmem>>, %arg6: memref<128x36xbf16, #tpu.memory_space<vmem>>) attributes {dimension_semantics = [#tpu.dimension_semantics<parallel>, #tpu.dimension_semantics<parallel>], iteration_bounds = array<i64: 2, 2>, scalar_prefetch = 0 : i64, scratch_operands = 1 : i64, tpu.core_type = #tpu.core_type<tc>, window_params = [{transform_indices = @transform_0, window_bounds = array<i64: 1, 18, 18, 4>}, {pipeline_mode = #tpu.pipeline_mode<synchronous>, transform_indices = @transform_1, window_bounds = array<i64: 8, 36>}, {pipeline_mode = #tpu.pipeline_mode<synchronous>, transform_indices = @transform_2, window_bounds = array<i64: 8, 1>}, {transform_indices = @transform_3, window_bounds = array<i64: 1, 8, 128>}]} {
    %c8_i32 = arith.constant 8 : i32
    %0 = arith.muli %arg1, %c8_i32 : i32
    %1 = tpu.assume_multiple %0, 8 : i32
    %c0_i32 = arith.constant 0 : i32
    %2 = arith.addi %1, %c0_i32 : i32
    %c0 = arith.constant 0 : index
    %3 = arith.index_cast %2 : i32 to index
    %c0_0 = arith.constant 0 : index
    %c0_1 = arith.constant 0 : index
    %4 = vector.load %arg2[%c0, %3, %c0_0, %c0_1] : memref<1x18x18x4xbf16, #tpu.memory_space<vmem>>, vector<1x8x16x4xbf16>
    %5 = vector.shape_cast %4 : vector<1x8x16x4xbf16> to vector<8x16x4xbf16>
    %6 = vector.shape_cast %5 : vector<8x16x4xbf16> to vector<128x4xbf16>
    %c0_2 = arith.constant 0 : index
    %c0_3 = arith.constant 0 : index
    %7 = vector.load %arg6[%c0_2, %c0_3] : memref<128x36xbf16, #tpu.memory_space<vmem>>, vector<128x4xbf16>
    tpu.vector_store %arg6[%c0_2, %c0_3], %6 {strides = array<i32>} : memref<128x36xbf16, #tpu.memory_space<vmem>>, vector<128x4xbf16>,
    %c0_i32_4 = arith.constant 0 : i32
    %8 = arith.addi %1, %c0_i32_4 : i32
    %c0_5 = arith.constant 0 : index
    %9 = arith.index_cast %8 : i32 to index
    %c1 = arith.constant 1 : index
    %c0_6 = arith.constant 0 : index
    %10 = vector.load %arg2[%c0_5, %9, %c1, %c0_6] : memref<1x18x18x4xbf16, #tpu.memory_space<vmem>>, vector<1x8x16x4xbf16>
    %11 = vector.shape_cast %10 : vector<1x8x16x4xbf16> to vector<8x16x4xbf16>
    %12 = vector.shape_cast %11 : vector<8x16x4xbf16> to vector<128x4xbf16>
    %c0_7 = arith.constant 0 : index
    %c4 = arith.constant 4 : index
    %13 = vector.load %arg6[%c0_7, %c4] : memref<128x36xbf16, #tpu.memory_space<vmem>>, vector<128x4xbf16>
    tpu.vector_store %arg6[%c0_7, %c4], %12 {strides = array<i32>} : memref<128x36xbf16, #tpu.memory_space<vmem>>, vector<128x4xbf16>,
    %c0_i32_8 = arith.constant 0 : i32
    %14 = arith.addi %1, %c0_i32_8 : i32
    %c0_9 = arith.constant 0 : index
    %15 = arith.index_cast %14 : i32 to index
    %c2 = arith.constant 2 : index
    %c0_10 = arith.constant 0 : index
    %16 = vector.load %arg2[%c0_9, %15, %c2, %c0_10] : memref<1x18x18x4xbf16, #tpu.memory_space<vmem>>, vector<1x8x16x4xbf16>
    %17 = vector.shape_cast %16 : vector<1x8x16x4xbf16> to vector<8x16x4xbf16>
    %18 = vector.shape_cast %17 : vector<8x16x4xbf16> to vector<128x4xbf16>
    %c0_11 = arith.constant 0 : index
    %c8 = arith.constant 8 : index
    %19 = vector.load %arg6[%c0_11, %c8] : memref<128x36xbf16, #tpu.memory_space<vmem>>, vector<128x4xbf16>
    tpu.vector_store %arg6[%c0_11, %c8], %18 {strides = array<i32>} : memref<128x36xbf16, #tpu.memory_space<vmem>>, vector<128x4xbf16>,
    %c1_i32 = arith.constant 1 : i32
    %20 = arith.addi %1, %c1_i32 : i32
    %c0_12 = arith.constant 0 : index
    %21 = arith.index_cast %20 : i32 to index
    %c0_13 = arith.constant 0 : index
    %c0_14 = arith.constant 0 : index
    %22 = vector.load %arg2[%c0_12, %21, %c0_13, %c0_14] : memref<1x18x18x4xbf16, #tpu.memory_space<vmem>>, vector<1x8x16x4xbf16>
    %23 = vector.shape_cast %22 : vector<1x8x16x4xbf16> to vector<8x16x4xbf16>
    %24 = vector.shape_cast %23 : vector<8x16x4xbf16> to vector<128x4xbf16>
    %c0_15 = arith.constant 0 : index
    %c12 = arith.constant 12 : index
    %25 = vector.load %arg6[%c0_15, %c12] : memref<128x36xbf16, #tpu.memory_space<vmem>>, vector<128x4xbf16>
    tpu.vector_store %arg6[%c0_15, %c12], %24 {strides = array<i32>} : memref<128x36xbf16, #tpu.memory_space<vmem>>, vector<128x4xbf16>,
    %c1_i32_16 = arith.constant 1 : i32
    %26 = arith.addi %1, %c1_i32_16 : i32
    %c0_17 = arith.constant 0 : index
    %27 = arith.index_cast %26 : i32 to index
    %c1_18 = arith.constant 1 : index
    %c0_19 = arith.constant 0 : index
    %28 = vector.load %arg2[%c0_17, %27, %c1_18, %c0_19] : memref<1x18x18x4xbf16, #tpu.memory_space<vmem>>, vector<1x8x16x4xbf16>
    %29 = vector.shape_cast %28 : vector<1x8x16x4xbf16> to vector<8x16x4xbf16>
    %30 = vector.shape_cast %29 : vector<8x16x4xbf16> to vector<128x4xbf16>
    %c0_20 = arith.constant 0 : index
    %c16 = arith.constant 16 : index
    %31 = vector.load %arg6[%c0_20, %c16] : memref<128x36xbf16, #tpu.memory_space<vmem>>, vector<128x4xbf16>
    tpu.vector_store %arg6[%c0_20, %c16], %30 {strides = array<i32>} : memref<128x36xbf16, #tpu.memory_space<vmem>>, vector<128x4xbf16>,
    %c1_i32_21 = arith.constant 1 : i32
    %32 = arith.addi %1, %c1_i32_21 : i32
    %c0_22 = arith.constant 0 : index
    %33 = arith.index_cast %32 : i32 to index
    %c2_23 = arith.constant 2 : index
    %c0_24 = arith.constant 0 : index
    %34 = vector.load %arg2[%c0_22, %33, %c2_23, %c0_24] : memref<1x18x18x4xbf16, #tpu.memory_space<vmem>>, vector<1x8x16x4xbf16>
    %35 = vector.shape_cast %34 : vector<1x8x16x4xbf16> to vector<8x16x4xbf16>
    %36 = vector.shape_cast %35 : vector<8x16x4xbf16> to vector<128x4xbf16>
    %c0_25 = arith.constant 0 : index
    %c20 = arith.constant 20 : index
    %37 = vector.load %arg6[%c0_25, %c20] : memref<128x36xbf16, #tpu.memory_space<vmem>>, vector<128x4xbf16>
    tpu.vector_store %arg6[%c0_25, %c20], %36 {strides = array<i32>} : memref<128x36xbf16, #tpu.memory_space<vmem>>, vector<128x4xbf16>,
    %c2_i32 = arith.constant 2 : i32
    %38 = arith.addi %1, %c2_i32 : i32
    %c0_26 = arith.constant 0 : index
    %39 = arith.index_cast %38 : i32 to index
    %c0_27 = arith.constant 0 : index
    %c0_28 = arith.constant 0 : index
    %40 = vector.load %arg2[%c0_26, %39, %c0_27, %c0_28] : memref<1x18x18x4xbf16, #tpu.memory_space<vmem>>, vector<1x8x16x4xbf16>
    %41 = vector.shape_cast %40 : vector<1x8x16x4xbf16> to vector<8x16x4xbf16>
    %42 = vector.shape_cast %41 : vector<8x16x4xbf16> to vector<128x4xbf16>
    %c0_29 = arith.constant 0 : index
    %c24 = arith.constant 24 : index
    %43 = vector.load %arg6[%c0_29, %c24] : memref<128x36xbf16, #tpu.memory_space<vmem>>, vector<128x4xbf16>
    tpu.vector_store %arg6[%c0_29, %c24], %42 {strides = array<i32>} : memref<128x36xbf16, #tpu.memory_space<vmem>>, vector<128x4xbf16>,
    %c2_i32_30 = arith.constant 2 : i32
    %44 = arith.addi %1, %c2_i32_30 : i32
    %c0_31 = arith.constant 0 : index
    %45 = arith.index_cast %44 : i32 to index
    %c1_32 = arith.constant 1 : index
    %c0_33 = arith.constant 0 : index
    %46 = vector.load %arg2[%c0_31, %45, %c1_32, %c0_33] : memref<1x18x18x4xbf16, #tpu.memory_space<vmem>>, vector<1x8x16x4xbf16>
    %47 = vector.shape_cast %46 : vector<1x8x16x4xbf16> to vector<8x16x4xbf16>
    %48 = vector.shape_cast %47 : vector<8x16x4xbf16> to vector<128x4xbf16>
    %c0_34 = arith.constant 0 : index
    %c28 = arith.constant 28 : index
    %49 = vector.load %arg6[%c0_34, %c28] : memref<128x36xbf16, #tpu.memory_space<vmem>>, vector<128x4xbf16>
    tpu.vector_store %arg6[%c0_34, %c28], %48 {strides = array<i32>} : memref<128x36xbf16, #tpu.memory_space<vmem>>, vector<128x4xbf16>,
    %c2_i32_35 = arith.constant 2 : i32
    %50 = arith.addi %1, %c2_i32_35 : i32
    %c0_36 = arith.constant 0 : index
    %51 = arith.index_cast %50 : i32 to index
    %c2_37 = arith.constant 2 : index
    %c0_38 = arith.constant 0 : index
    %52 = vector.load %arg2[%c0_36, %51, %c2_37, %c0_38] : memref<1x18x18x4xbf16, #tpu.memory_space<vmem>>, vector<1x8x16x4xbf16>
    %53 = vector.shape_cast %52 : vector<1x8x16x4xbf16> to vector<8x16x4xbf16>
    %54 = vector.shape_cast %53 : vector<8x16x4xbf16> to vector<128x4xbf16>
    %c0_39 = arith.constant 0 : index
    %c32 = arith.constant 32 : index
    %55 = vector.load %arg6[%c0_39, %c32] : memref<128x36xbf16, #tpu.memory_space<vmem>>, vector<128x4xbf16>
    tpu.vector_store %arg6[%c0_39, %c32], %54 {strides = array<i32>} : memref<128x36xbf16, #tpu.memory_space<vmem>>, vector<128x4xbf16>,
    %c0_40 = arith.constant 0 : index
    %c0_41 = arith.constant 0 : index
    %56 = vector.load %arg3[%c0_40, %c0_41] : memref<8x36xbf16, #tpu.memory_space<vmem>>, vector<8x36xbf16>
    %c0_42 = arith.constant 0 : index
    %c0_43 = arith.constant 0 : index
    %57 = vector.load %arg6[%c0_42, %c0_43] : memref<128x36xbf16, #tpu.memory_space<vmem>>, vector<128x36xbf16>
    %cst = arith.constant dense<0.000000e+00> : vector<8x128xf32>
    %58 = tpu.matmul %56, %57, %cst {dimension_numbers = #tpu.dot_dimension_numbers<[1], [1], [0], [0], [0, 0, 1, 0], [], []>} : vector<8x36xbf16>, vector<128x36xbf16>, vector<8x128xf32> -> vector<8x128xf32>
    %c0_44 = arith.constant 0 : index
    %c0_45 = arith.constant 0 : index
    %59 = vector.load %arg4[%c0_44, %c0_45] : memref<8x1xf32, #tpu.memory_space<vmem>>, vector<8x1xf32>
    %60 = vector.broadcast %59 : vector<8x1xf32> to vector<8x128xf32>
    %61 = arith.addf %58, %60 : vector<8x128xf32>
    %c0_46 = arith.constant 0 : index
    %c0_47 = arith.constant 0 : index
    %c0_48 = arith.constant 0 : index
    %62 = vector.load %arg5[%c0_46, %c0_47, %c0_48] : memref<1x8x128xf32, #tpu.memory_space<vmem>>, vector<1x8x128xf32>
    %63 = vector.shape_cast %62 : vector<1x8x128xf32> to vector<8x128xf32>
    %64 = vector.shape_cast %61 : vector<8x128xf32> to vector<1x8x128xf32>
    tpu.vector_store %arg5[%c0_46, %c0_47, %c0_48], %64 {strides = array<i32>} : memref<1x8x128xf32, #tpu.memory_space<vmem>>, vector<1x8x128xf32>,
    return
  }
  func.func @transform_0(%arg0: i32, %arg1: i32) -> (i32, i32, i32, i32) {
    %c0_i32 = arith.constant 0 : i32
    %c0_i32_0 = arith.constant 0 : i32
    %c0_i32_1 = arith.constant 0 : i32
    %c0_i32_2 = arith.constant 0 : i32
    return %arg0, %c0_i32, %c0_i32_0, %c0_i32_1 : i32, i32, i32, i32
  }
  func.func @transform_1(%arg0: i32, %arg1: i32) -> (i32, i32) {
    %c0_i32 = arith.constant 0 : i32
    %c0_i32_0 = arith.constant 0 : i32
    %c0_i32_1 = arith.constant 0 : i32
    return %c0_i32, %c0_i32_0 : i32, i32
  }
  func.func @transform_2(%arg0: i32, %arg1: i32) -> (i32, i32) {
    %c0_i32 = arith.constant 0 : i32
    %c0_i32_0 = arith.constant 0 : i32
    %c0_i32_1 = arith.constant 0 : i32
    return %c0_i32, %c0_i32_0 : i32, i32
  }
  func.func @transform_3(%arg0: i32, %arg1: i32) -> (i32, i32, i32) {
    %c0_i32 = arith.constant 0 : i32
    %c0_i32_0 = arith.constant 0 : i32
    return %arg0, %c0_i32, %arg1 : i32, i32, i32
  }
}

</mosaic_0001>

<llo_original>
// kernel: depth_sep_conv2d_fused.1
$region0: #{depth_sep_conv2d_fused.1}
  #allocation0 [shape = 'u32[]', space=smem, size = 0x4, offset = 0x4, fixed_abs, tag = 'smem constant byte address 0x4 - core index']
  #allocation1 [shape = 'u32[72,128]{1,0:T(1,128)}', space=vmem, size = 0x9000, scoped, tag = 'internal scratch']
  #allocation2 [shape = 'bf16[128,36]{1,0:T(8,128)(2,1)}', space=vmem, size = 0x8000, scoped, tag = 'scratch operand']
  %s0 = inlined_call_operand.vmem [shape: bf16[2,18,18,4], index: 0, kind: input, shape index: {}]
  %s1 = inlined_call_operand.vmem [shape: bf16[8,36], index: 1, kind: input, shape index: {}]
  %s2 = inlined_call_operand.vmem [shape: f32[8,1], index: 2, kind: input, shape index: {}]
  %s3 = inlined_call_operand.vmem [shape: f32[2,8,256], index: 3, kind: output, shape index: {}]
  %s4 = sld [smem:[#allocation0]]
  $region45: #{depth_sep_conv2d_fused.1} parent=0
    _
  %s6 = ssub.s32 1, %s4
  %s7 = scalar_select 0, %s6, %s4
  loop: start=0, step=1, limit=6
  $region2: #{depth_sep_conv2d_fused.1} parent=0 // loop_pre_header
    _
  $region3: #{depth_sep_conv2d_fused.1} parent=0 // loop_header
    %s9 = sphi 0, %s13
    %p10 = scmp.ge.s32.totalorder %s9, 6
    %s16 = sphi 0, %s28
    %s17 = sphi 0, %s24
    %s18 = sphi 0, %s16
    %s19 = sphi 0, %s17
    %s20 = sphi 0, %s18
    %s21 = sphi 0, %s19
    %s31 = sphi 0, %s33
    %s34 = sphi 0, %s31
    %s35 = sphi 0, %s34
    %s51 = sphi 0, %s35
    %s55 = sphi 0, %s55
    %s57 = sphi 0, %s55
    %s58 = sphi 0, %s57
    %s72 = sphi 0, %s58
    %s76 = sphi 0, %s76
    %s78 = sphi 0, %s76
    %s79 = sphi 0, %s78
    %s93 = sphi 0, %s79
    %s101 = sphi 0, %s103
    %s104 = sphi 0, %s101
    %s105 = sphi 0, %s104
    %s121 = sphi 0, %s105
  $region4: #{depth_sep_conv2d_fused.1} parent=0 // loop_header_branch
    %12 = sbr.rel (%p10) target = $region8
  $region5: #{depth_sep_conv2d_fused.1} parent=0 // loop_body
    %s14 = ssub.s32 %s9, 1
    %s15 = ssub.s32 %s9, 2
    %s22 = sadd.s32 1, %s17
    %p23 = scmp.ge.s32.totalorder %s22, 2
    %s24 = scalar_select %p23, 0, %s22
    %s25 = sadd.s32 1, %s16
    %s26 = scalar_select %p23, %s25, %s16
    %p27 = scmp.ge.s32.totalorder %s26, 2
    %s28 = scalar_select %p27, 0, %s26
    %s29 = ssub.s32 %s16, %s28
    %p30 = scmp.eq.s32.totalorder %s29, 0
    %s32 = sadd.s32 %s31, 1
    %s33 = scalar_select %p30, %s31, %s32
    %p36 = pneg %p30
    %p37 = scmp.eq.s32.totalorder %s9, 3
    %p38 = por %p36, %p37
    %p39 = scmp.ne.s32.totalorder %s31, %s34
    %p40 = scmp.eq.s32.totalorder %s9, 0
    %p41 = por %p39, %p40
    %p42 = scmp.ne.s32.totalorder %s31, %s34
    %p43 = scmp.eq.s32.totalorder %s14, 3
    %p44 = por %p42, %p43
    %p45 = scmp.ne.s32.totalorder %s34, %s35
    %p46 = scmp.eq.s32.totalorder %s14, 0
    %p47 = por %p45, %p46
    %p48 = scmp.ne.s32.totalorder %s34, %s35
    %p49 = scmp.eq.s32.totalorder %s15, 3
    %p50 = por %p48, %p49
    %p52 = scmp.ne.s32.totalorder %s35, %s51
    %p53 = scmp.eq.s32.totalorder %s15, 0
    %p54 = por %p52, %p53
    %s56 = sadd.s32 %s55, 1
    %p59 = scmp.eq.s32.totalorder %s9, 3
    %p60 = scmp.ne.s32.totalorder %s55, %s57
    %p61 = scmp.eq.s32.totalorder %s9, 0
    %p62 = por %p60, %p61
    %p63 = scmp.ne.s32.totalorder %s55, %s57
    %p64 = scmp.eq.s32.totalorder %s14, 3
    %p65 = por %p63, %p64
    %p66 = scmp.ne.s32.totalorder %s57, %s58
    %p67 = scmp.eq.s32.totalorder %s14, 0
    %p68 = por %p66, %p67
    %p69 = scmp.ne.s32.totalorder %s57, %s58
    %p70 = scmp.eq.s32.totalorder %s15, 3
    %p71 = por %p69, %p70
    %p73 = scmp.ne.s32.totalorder %s58, %s72
    %p74 = scmp.eq.s32.totalorder %s15, 0
    %p75 = por %p73, %p74
    %s77 = sadd.s32 %s76, 1
    %p80 = scmp.eq.s32.totalorder %s9, 3
    %p81 = scmp.ne.s32.totalorder %s76, %s78
    %p82 = scmp.eq.s32.totalorder %s9, 0
    %p83 = por %p81, %p82
    %p84 = scmp.ne.s32.totalorder %s76, %s78
    %p85 = scmp.eq.s32.totalorder %s14, 3
    %p86 = por %p84, %p85
    %p87 = scmp.ne.s32.totalorder %s78, %s79
    %p88 = scmp.eq.s32.totalorder %s14, 0
    %p89 = por %p87, %p88
    %p90 = scmp.ne.s32.totalorder %s78, %s79
    %p91 = scmp.eq.s32.totalorder %s15, 3
    %p92 = por %p90, %p91
    %p94 = scmp.ne.s32.totalorder %s79, %s93
    %p95 = scmp.eq.s32.totalorder %s15, 0
    %p96 = por %p94, %p95
    %s97 = ssub.s32 %s16, %s28
    %s98 = ssub.s32 %s17, %s24
    %s99 = sor.u32 %s97, %s98
    %p100 = scmp.eq.s32.totalorder %s99, 0
    %s102 = sadd.s32 %s101, 1
    %s103 = scalar_select %p100, %s101, %s102
    %p106 = pneg %p100
    %p107 = scmp.eq.s32.totalorder %s9, 3
    %p108 = por %p106, %p107
    %p109 = scmp.ne.s32.totalorder %s101, %s104
    %p110 = scmp.eq.s32.totalorder %s9, 0
    %p111 = por %p109, %p110
    %p112 = scmp.ne.s32.totalorder %s101, %s104
    %p113 = scmp.eq.s32.totalorder %s14, 3
    %p114 = por %p112, %p113
    %p115 = scmp.ne.s32.totalorder %s104, %s105
    %p116 = scmp.eq.s32.totalorder %s14, 0
    %p117 = por %p115, %p116
    %p118 = scmp.ne.s32.totalorder %s104, %s105
    %p119 = scmp.eq.s32.totalorder %s15, 3
    %p120 = por %p118, %p119
    %p122 = scmp.ne.s32.totalorder %s105, %s121
    %p123 = scmp.eq.s32.totalorder %s15, 0
    %p124 = por %p122, %p123
    %p125 = scmp.le.s32.totalorder 1, %s9
    %p126 = scmp.lt.s32.totalorder %s9, 5
    %p127 = pnand %p125, %p126
    %p128 = pneg %p127
    // Predicated region
    $region9: #{depth_sep_conv2d_fused.1} parent=5 // pred_check
      _
    $region10: #{depth_sep_conv2d_fused.1} parent=5 // pred_check_branch
      %130 = sbr.rel (%p127) target = $region12
    $region11: #{depth_sep_conv2d_fused.1} parent=5 // pred_region
      %s131 = ssub.s32 %s9, 1
      // Predicated region
      $region13: #{depth_sep_conv2d_fused.1} parent=11 // pred_check
        %p132 = pneg %p68
      $region14: #{depth_sep_conv2d_fused.1} parent=11 // pred_check_branch
        %134 = sbr.rel (%p132) target = $region16
      $region15: #{depth_sep_conv2d_fused.1} parent=11 // pred_region
        _
      $region16: #{depth_sep_conv2d_fused.1} parent=11 // pred_fallthru
        _
      // Predicated region
      $region17: #{depth_sep_conv2d_fused.1} parent=11 // pred_check
        %p135 = pneg %p89
      $region18: #{depth_sep_conv2d_fused.1} parent=11 // pred_check_branch
        %137 = sbr.rel (%p135) target = $region20
      $region19: #{depth_sep_conv2d_fused.1} parent=11 // pred_region
        _
      $region20: #{depth_sep_conv2d_fused.1} parent=11 // pred_fallthru
        _
    $region12: #{depth_sep_conv2d_fused.1} parent=5 // pred_fallthru
      _
    %p138 = scmp.lt.s32.totalorder %s9, 4
    // Predicated region
    $region21: #{depth_sep_conv2d_fused.1} parent=5 // pred_check
      %p139 = pneg %p138
    $region22: #{depth_sep_conv2d_fused.1} parent=5 // pred_check_branch
      %141 = sbr.rel (%p139) target = $region24
    $region23: #{depth_sep_conv2d_fused.1} parent=5 // pred_region
      // Predicated region
      $region25: #{depth_sep_conv2d_fused.1} parent=23 // pred_check
        %p142 = pneg %p41
      $region26: #{depth_sep_conv2d_fused.1} parent=23 // pred_check_branch
        %144 = sbr.rel (%p142) target = $region28
      $region27: #{depth_sep_conv2d_fused.1} parent=23 // pred_region
        %p145 = scmp.lt.s32.totalorder %s16, 1
        %s146 = scalar_select %p145, %s16, 1
        %s147 = smul.addr %s146, 54
        %s148 = smul.addr %s147, 4
        %s149 = scalar_lea.vmem %s0, %s148
      $region28: #{depth_sep_conv2d_fused.1} parent=23 // pred_fallthru
        _
    $region24: #{depth_sep_conv2d_fused.1} parent=5 // pred_fallthru
      _
    %p150 = scmp.le.s32.totalorder 1, %s9
    %p151 = scmp.lt.s32.totalorder %s9, 5
    %p152 = pnand %p150, %p151
    %p153 = pneg %p152
    // Predicated region
    $region29: #{depth_sep_conv2d_fused.1} parent=5 // pred_check
      _
    $region30: #{depth_sep_conv2d_fused.1} parent=5 // pred_check_branch
      %155 = sbr.rel (%p152) target = $region32
    $region31: #{depth_sep_conv2d_fused.1} parent=5 // pred_region
      %s156 = ssub.s32 %s9, 1
      %p157 = scmp.lt.s32.totalorder %s18, 1
      %s158 = scalar_select %p157, %s18, 1
      %s159 = smul.addr %s158, 54
      %s160 = smul.addr %s159, 4
      %s161 = scalar_lea.vmem %s0, %s160
      %p162 = pneg %p47
      %p163 = pneg %p44
      %p164 = pneg %p68
      %p165 = pneg %p65
      %p166 = pneg %p89
      %p167 = pneg %p86
      %p168 = pneg %p117
      %p169 = pneg %p114
      %p170 = scmp.lt.s32.totalorder %s18, 1
      %s171 = scalar_select %p170, %s18, 1
      %p172 = scmp.lt.s32.totalorder %s19, 1
      %s173 = scalar_select %p172, %s19, 1
      %s174 = smul.addr %s171, 2
      %s175 = sadd.s32 %s173, %s174
      %s176 = smul.addr %s175, 8
      %s177 = scalar_lea.vmem %s3, %s176
      %p178 = scmp.lt.s32.totalorder %s18, 1
      %s179 = scalar_select %p178, %s18, 1
      %s180 = smul.addr %s179, 54
      %s181 = smul.addr %s180, 4
      %s182 = scalar_lea.vmem %s0, %s181
      %p183 = scmp.lt.s32.totalorder %s18, 1
      %s184 = scalar_select %p183, %s18, 1
      %p185 = scmp.lt.s32.totalorder %s19, 1
      %s186 = scalar_select %p185, %s19, 1
      %s187 = smul.addr %s184, 2
      %s188 = sadd.s32 %s186, %s187
      %s189 = smul.addr %s188, 8
      %s190 = scalar_lea.vmem %s3, %s189
      %s191 = smul.u32 %s19, 8
      %s192 = smul.u32 %s191, 3
      %s193 = smul.addr %s192, 4
      %s194 = scalar_lea.vmem %s182, %s193
      %v195 = vld [vmem:[%s194] sm:$0xf]
      %v196 = vld [vmem:[%s194 + $0x4] sm:$0xf]
      %v197 = vld [vmem:[%s194 + $0xc] sm:$0xf]
      %v198 = vld [vmem:[%s194 + $0x10] sm:$0xf]
      %v199 = vld [vmem:[%s194 + $0x18] sm:$0xf]
      %v200 = vld [vmem:[%s194 + $0x1c] sm:$0xf]
      %v201 = vld [vmem:[%s194 + $0x24] sm:$0xf]
      %v202 = vld [vmem:[%s194 + $0x28] sm:$0xf]
      %v203 = vld [vmem:[%s194 + $0x30] sm:$0xf]
      %v204 = vld [vmem:[%s194 + $0x34] sm:$0xf]
      %v205 = vld [vmem:[%s194 + $0x3c] sm:$0xf]
      %v206 = vld [vmem:[%s194 + $0x40] sm:$0xf]
      %v207 = vld [vmem:[%s194 + $0x48] sm:$0xf]
      %v208 = vld [vmem:[%s194 + $0x4c] sm:$0xf]
      %v209 = vld [vmem:[%s194 + $0x54] sm:$0xf]
      %v210 = vld [vmem:[%s194 + $0x58] sm:$0xf]
      %vm211 = vcmask 27648
      %212 = vst.msk [vmem:[#allocation2] sm:$0xf] %vm211, %v195
      %213 = vst.msk [vmem:[#allocation2 + $0x4] sm:$0xf] %vm211, %v196
      %214 = vst.msk [vmem:[#allocation2 + $0x8] sm:$0xf] %vm211, %v197
      %215 = vst.msk [vmem:[#allocation2 + $0xc] sm:$0xf] %vm211, %v198
      %216 = vst.msk [vmem:[#allocation2 + $0x10] sm:$0xf] %vm211, %v199
      %217 = vst.msk [vmem:[#allocation2 + $0x14] sm:$0xf] %vm211, %v200
      %218 = vst.msk [vmem:[#allocation2 + $0x18] sm:$0xf] %vm211, %v201
      %219 = vst.msk [vmem:[#allocation2 + $0x1c] sm:$0xf] %vm211, %v202
      %220 = vst.msk [vmem:[#allocation2 + $0x20] sm:$0xf] %vm211, %v203
      %221 = vst.msk [vmem:[#allocation2 + $0x24] sm:$0xf] %vm211, %v204
      %222 = vst.msk [vmem:[#allocation2 + $0x28] sm:$0xf] %vm211, %v205
      %223 = vst.msk [vmem:[#allocation2 + $0x2c] sm:$0xf] %vm211, %v206
      %224 = vst.msk [vmem:[#allocation2 + $0x30] sm:$0xf] %vm211, %v207
      %225 = vst.msk [vmem:[#allocation2 + $0x34] sm:$0xf] %vm211, %v208
      %226 = vst.msk [vmem:[#allocation2 + $0x38] sm:$0xf] %vm211, %v209
      %227 = vst.msk [vmem:[#allocation2 + $0x3c] sm:$0xf] %vm211, %v210
      %v228 = vld [vmem:[%s194] sm:$0xf]
      %v229 = vld [vmem:[%s194 + $0x4] sm:$0xf]
      %v230 = vld [vmem:[%s194 + $0x8] sm:$0x1]
      %v231 = vld [vmem:[%s194 + $0xc] sm:$0xf]
      %v232 = vld [vmem:[%s194 + $0x10] sm:$0xf]
      %v233 = vld [vmem:[%s194 + $0x14] sm:$0x1]
      %v234 = vld [vmem:[%s194 + $0x18] sm:$0xf]
      %v235 = vld [vmem:[%s194 + $0x1c] sm:$0xf]
      %v236 = vld [vmem:[%s194 + $0x20] sm:$0x1]
      %v237 = vld [vmem:[%s194 + $0x24] sm:$0xf]
      %v238 = vld [vmem:[%s194 + $0x28] sm:$0xf]
      %v239 = vld [vmem:[%s194 + $0x2c] sm:$0x1]
      %v240 = vld [vmem:[%s194 + $0x30] sm:$0xf]
      %v241 = vld [vmem:[%s194 + $0x34] sm:$0xf]
      %v242 = vld [vmem:[%s194 + $0x38] sm:$0x1]
      %v243 = vld [vmem:[%s194 + $0x3c] sm:$0xf]
      %v244 = vld [vmem:[%s194 + $0x40] sm:$0xf]
      %v245 = vld [vmem:[%s194 + $0x44] sm:$0x1]
      %v246 = vld [vmem:[%s194 + $0x48] sm:$0xf]
      %v247 = vld [vmem:[%s194 + $0x4c] sm:$0xf]
      %v248 = vld [vmem:[%s194 + $0x50] sm:$0x1]
      %v249 = vld [vmem:[%s194 + $0x54] sm:$0xf]
      %v250 = vld [vmem:[%s194 + $0x58] sm:$0xf]
      %v251 = vld [vmem:[%s194 + $0x5c] sm:$0x1]
      %vm252 = vsmask.f32 3328
      %vm253 = vsmask.f32 7440
      %vm254 = vmor %vm252, %vm253
      %v256 = vshrl.u32 %v228, 16
      %v258 = vrot.slane %v256, 4
      %v259 = vshll.u32 %v228, 16
      %v261 = vrot.slane %v259, 5
      %v262 = vor.u32 %v258, %v261
      %v263 = vrot.slane %v262, 4
      %v265 = vshll.u32 %v229, 16
      %v267 = vrot.slane %v265, 5
      %v268 = vsel %vm254, %v263, %v267
      %v269 = vshrl.u32 %v229, 16
      %v271 = vrot.slane %v269, 4
      %v272 = vor.u32 %v271, %v267
      %v273 = vrot.slane %v272, 4
      %v275 = vshll.u32 %v230, 16
      %v277 = vrot.slane %v275, 5
      %v278 = vsel %vm254, %v273, %v277
      %v280 = vshrl.u32 %v231, 16
      %v282 = vrot.slane %v280, 4
      %v283 = vshll.u32 %v231, 16
      %v285 = vrot.slane %v283, 5
      %v286 = vor.u32 %v282, %v285
      %v287 = vrot.slane %v286, 4
      %v289 = vshll.u32 %v232, 16
      %v291 = vrot.slane %v289, 5
      %v292 = vsel %vm254, %v287, %v291
      %v293 = vshrl.u32 %v232, 16
      %v295 = vrot.slane %v293, 4
      %v296 = vor.u32 %v295, %v291
      %v297 = vrot.slane %v296, 4
      %v299 = vshll.u32 %v233, 16
      %v301 = vrot.slane %v299, 5
      %v302 = vsel %vm254, %v297, %v301
      %v304 = vshrl.u32 %v234, 16
      %v306 = vrot.slane %v304, 4
      %v307 = vshll.u32 %v234, 16
      %v309 = vrot.slane %v307, 5
      %v310 = vor.u32 %v306, %v309
      %v311 = vrot.slane %v310, 4
      %v313 = vshll.u32 %v235, 16
      %v315 = vrot.slane %v313, 5
      %v316 = vsel %vm254, %v311, %v315
      %v317 = vshrl.u32 %v235, 16
      %v319 = vrot.slane %v317, 4
      %v320 = vor.u32 %v319, %v315
      %v321 = vrot.slane %v320, 4
      %v323 = vshll.u32 %v236, 16
      %v325 = vrot.slane %v323, 5
      %v326 = vsel %vm254, %v321, %v325
      %v328 = vshrl.u32 %v237, 16
      %v330 = vrot.slane %v328, 4
      %v331 = vshll.u32 %v237, 16
      %v333 = vrot.slane %v331, 5
      %v334 = vor.u32 %v330, %v333
      %v335 = vrot.slane %v334, 4
      %v337 = vshll.u32 %v238, 16
      %v339 = vrot.slane %v337, 5
      %v340 = vsel %vm254, %v335, %v339
      %v341 = vshrl.u32 %v238, 16
      %v343 = vrot.slane %v341, 4
      %v344 = vor.u32 %v343, %v339
      %v345 = vrot.slane %v344, 4
      %v347 = vshll.u32 %v239, 16
      %v349 = vrot.slane %v347, 5
      %v350 = vsel %vm254, %v345, %v349
      %v352 = vshrl.u32 %v240, 16
      %v354 = vrot.slane %v352, 4
      %v355 = vshll.u32 %v240, 16
      %v357 = vrot.slane %v355, 5
      %v358 = vor.u32 %v354, %v357
      %v359 = vrot.slane %v358, 4
      %v361 = vshll.u32 %v241, 16
      %v363 = vrot.slane %v361, 5
      %v364 = vsel %vm254, %v359, %v363
      %v365 = vshrl.u32 %v241, 16
      %v367 = vrot.slane %v365, 4
      %v368 = vor.u32 %v367, %v363
      %v369 = vrot.slane %v368, 4
      %v371 = vshll.u32 %v242, 16
      %v373 = vrot.slane %v371, 5
      %v374 = vsel %vm254, %v369, %v373
      %v376 = vshrl.u32 %v243, 16
      %v378 = vrot.slane %v376, 4
      %v379 = vshll.u32 %v243, 16
      %v381 = vrot.slane %v379, 5
      %v382 = vor.u32 %v378, %v381
      %v383 = vrot.slane %v382, 4
      %v385 = vshll.u32 %v244, 16
      %v387 = vrot.slane %v385, 5
      %v388 = vsel %vm254, %v383, %v387
      %v389 = vshrl.u32 %v244, 16
      %v391 = vrot.slane %v389, 4
      %v392 = vor.u32 %v391, %v387
      %v393 = vrot.slane %v392, 4
      %v395 = vshll.u32 %v245, 16
      %v397 = vrot.slane %v395, 5
      %v398 = vsel %vm254, %v393, %v397
      %v400 = vshrl.u32 %v246, 16
      %v402 = vrot.slane %v400, 4
      %v403 = vshll.u32 %v246, 16
      %v405 = vrot.slane %v403, 5
      %v406 = vor.u32 %v402, %v405
      %v407 = vrot.slane %v406, 4
      %v409 = vshll.u32 %v247, 16
      %v411 = vrot.slane %v409, 5
      %v412 = vsel %vm254, %v407, %v411
      %v413 = vshrl.u32 %v247, 16
      %v415 = vrot.slane %v413, 4
      %v416 = vor.u32 %v415, %v411
      %v417 = vrot.slane %v416, 4
      %v419 = vshll.u32 %v248, 16
      %v421 = vrot.slane %v419, 5
      %v422 = vsel %vm254, %v417, %v421
      %v424 = vshrl.u32 %v249, 16
      %v426 = vrot.slane %v424, 4
      %v427 = vshll.u32 %v249, 16
      %v429 = vrot.slane %v427, 5
      %v430 = vor.u32 %v426, %v429
      %v431 = vrot.slane %v430, 4
      %v433 = vshll.u32 %v250, 16
      %v435 = vrot.slane %v433, 5
      %v436 = vsel %vm254, %v431, %v435
      %v437 = vshrl.u32 %v250, 16
      %v439 = vrot.slane %v437, 4
      %v440 = vor.u32 %v439, %v435
      %v441 = vrot.slane %v440, 4
      %v443 = vshll.u32 %v251, 16
      %v445 = vrot.slane %v443, 5
      %v446 = vsel %vm254, %v441, %v445
      %447 = vrot.lane.b32.xlu0 %v268, 4
      %v448 = vpop.permute.xlu0 %447
      %449 = vrot.lane.b32.xlu0 %v278, 4
      %v450 = vpop.permute.xlu0 %449
      %451 = vrot.lane.b32.xlu0 %v292, 4
      %v452 = vpop.permute.xlu0 %451
      %453 = vrot.lane.b32.xlu0 %v302, 4
      %v454 = vpop.permute.xlu0 %453
      %455 = vrot.lane.b32.xlu0 %v316, 4
      %v456 = vpop.permute.xlu0 %455
      %457 = vrot.lane.b32.xlu0 %v326, 4
      %v458 = vpop.permute.xlu0 %457
      %459 = vrot.lane.b32.xlu0 %v340, 4
      %v460 = vpop.permute.xlu0 %459
      %461 = vrot.lane.b32.xlu0 %v350, 4
      %v462 = vpop.permute.xlu0 %461
      %463 = vrot.lane.b32.xlu0 %v364, 4
      %v464 = vpop.permute.xlu0 %463
      %465 = vrot.lane.b32.xlu0 %v374, 4
      %v466 = vpop.permute.xlu0 %465
      %467 = vrot.lane.b32.xlu0 %v388, 4
      %v468 = vpop.permute.xlu0 %467
      %469 = vrot.lane.b32.xlu0 %v398, 4
      %v470 = vpop.permute.xlu0 %469
      %471 = vrot.lane.b32.xlu0 %v412, 4
      %v472 = vpop.permute.xlu0 %471
      %473 = vrot.lane.b32.xlu0 %v422, 4
      %v474 = vpop.permute.xlu0 %473
      %475 = vrot.lane.b32.xlu0 %v436, 4
      %v476 = vpop.permute.xlu0 %475
      %477 = vrot.lane.b32.xlu0 %v446, 4
      %v478 = vpop.permute.xlu0 %477
      %vm495 = vcmask 60448
      %496 = vst.msk [vmem:[#allocation2] sm:$0xf] %vm495, %v448
      %497 = vst.msk [vmem:[#allocation2 + $0x4] sm:$0xf] %vm495, %v450
      %498 = vst.msk [vmem:[#allocation2 + $0x8] sm:$0xf] %vm495, %v452
      %499 = vst.msk [vmem:[#allocation2 + $0xc] sm:$0xf] %vm495, %v454
      %500 = vst.msk [vmem:[#allocation2 + $0x10] sm:$0xf] %vm495, %v456
      %501 = vst.msk [vmem:[#allocation2 + $0x14] sm:$0xf] %vm495, %v458
      %502 = vst.msk [vmem:[#allocation2 + $0x18] sm:$0xf] %vm495, %v460
      %503 = vst.msk [vmem:[#allocation2 + $0x1c] sm:$0xf] %vm495, %v462
      %504 = vst.msk [vmem:[#allocation2 + $0x20] sm:$0xf] %vm495, %v464
      %505 = vst.msk [vmem:[#allocation2 + $0x24] sm:$0xf] %vm495, %v466
      %506 = vst.msk [vmem:[#allocation2 + $0x28] sm:$0xf] %vm495, %v468
      %507 = vst.msk [vmem:[#allocation2 + $0x2c] sm:$0xf] %vm495, %v470
      %508 = vst.msk [vmem:[#allocation2 + $0x30] sm:$0xf] %vm495, %v472
      %509 = vst.msk [vmem:[#allocation2 + $0x34] sm:$0xf] %vm495, %v474
      %510 = vst.msk [vmem:[#allocation2 + $0x38] sm:$0xf] %vm495, %v476
      %511 = vst.msk [vmem:[#allocation2 + $0x3c] sm:$0xf] %vm495, %v478
      %v512 = vld [vmem:[%s194] sm:$0xe]
      %v513 = vld [vmem:[%s194 + $0x4] sm:$0xf]
      %v514 = vld [vmem:[%s194 + $0x8] sm:$0x1]
      %v515 = vld [vmem:[%s194 + $0xc] sm:$0xe]
      %v516 = vld [vmem:[%s194 + $0x10] sm:$0xf]
      %v517 = vld [vmem:[%s194 + $0x14] sm:$0x1]
      %v518 = vld [vmem:[%s194 + $0x18] sm:$0xe]
      %v519 = vld [vmem:[%s194 + $0x1c] sm:$0xf]
      %v520 = vld [vmem:[%s194 + $0x20] sm:$0x1]
      %v521 = vld [vmem:[%s194 + $0x24] sm:$0xe]
      %v522 = vld [vmem:[%s194 + $0x28] sm:$0xf]
      %v523 = vld [vmem:[%s194 + $0x2c] sm:$0x1]
      %v524 = vld [vmem:[%s194 + $0x30] sm:$0xe]
      %v525 = vld [vmem:[%s194 + $0x34] sm:$0xf]
      %v526 = vld [vmem:[%s194 + $0x38] sm:$0x1]
      %v527 = vld [vmem:[%s194 + $0x3c] sm:$0xe]
      %v528 = vld [vmem:[%s194 + $0x40] sm:$0xf]
      %v529 = vld [vmem:[%s194 + $0x44] sm:$0x1]
      %v530 = vld [vmem:[%s194 + $0x48] sm:$0xe]
      %v531 = vld [vmem:[%s194 + $0x4c] sm:$0xf]
      %v532 = vld [vmem:[%s194 + $0x50] sm:$0x1]
      %v533 = vld [vmem:[%s194 + $0x54] sm:$0xe]
      %v534 = vld [vmem:[%s194 + $0x58] sm:$0xf]
      %v535 = vld [vmem:[%s194 + $0x5c] sm:$0x1]
      %vm560 = vcmask 1042432
      %vm561 = vcmask 1046532
      %vm562 = vmor %vm560, %vm561
      %v563 = vrot.slane %v512, 5
      %v564 = vrot.slane %v563, 4
      %v565 = vrot.slane %v513, 5
      %v566 = vsel %vm562, %v564, %v565
      %v567 = vrot.slane %v565, 4
      %v568 = vrot.slane %v514, 5
      %v569 = vsel %vm562, %v567, %v568
      %v570 = vrot.slane %v515, 5
      %v571 = vrot.slane %v570, 4
      %v572 = vrot.slane %v516, 5
      %v573 = vsel %vm562, %v571, %v572
      %v574 = vrot.slane %v572, 4
      %v575 = vrot.slane %v517, 5
      %v576 = vsel %vm562, %v574, %v575
      %v577 = vrot.slane %v518, 5
      %v578 = vrot.slane %v577, 4
      %v579 = vrot.slane %v519, 5
      %v580 = vsel %vm562, %v578, %v579
      %v581 = vrot.slane %v579, 4
      %v582 = vrot.slane %v520, 5
      %v583 = vsel %vm562, %v581, %v582
      %v584 = vrot.slane %v521, 5
      %v585 = vrot.slane %v584, 4
      %v586 = vrot.slane %v522, 5
      %v587 = vsel %vm562, %v585, %v586
      %v588 = vrot.slane %v586, 4
      %v589 = vrot.slane %v523, 5
      %v590 = vsel %vm562, %v588, %v589
      %v591 = vrot.slane %v524, 5
      %v592 = vrot.slane %v591, 4
      %v593 = vrot.slane %v525, 5
      %v594 = vsel %vm562, %v592, %v593
      %v595 = vrot.slane %v593, 4
      %v596 = vrot.slane %v526, 5
      %v597 = vsel %vm562, %v595, %v596
      %v598 = vrot.slane %v527, 5
      %v599 = vrot.slane %v598, 4
      %v600 = vrot.slane %v528, 5
      %v601 = vsel %vm562, %v599, %v600
      %v602 = vrot.slane %v600, 4
      %v603 = vrot.slane %v529, 5
      %v604 = vsel %vm562, %v602, %v603
      %v605 = vrot.slane %v530, 5
      %v606 = vrot.slane %v605, 4
      %v607 = vrot.slane %v531, 5
      %v608 = vsel %vm562, %v606, %v607
      %v609 = vrot.slane %v607, 4
      %v610 = vrot.slane %v532, 5
      %v611 = vsel %vm562, %v609, %v610
      %v612 = vrot.slane %v533, 5
      %v613 = vrot.slane %v612, 4
      %v614 = vrot.slane %v534, 5
      %v615 = vsel %vm562, %v613, %v614
      %v616 = vrot.slane %v614, 4
      %v617 = vrot.slane %v535, 5
      %v618 = vsel %vm562, %v616, %v617
      %619 = vrot.lane.b32.xlu0 %v566, 8
      %v620 = vpop.permute.xlu0 %619
      %621 = vrot.lane.b32.xlu0 %v569, 8
      %v622 = vpop.permute.xlu0 %621
      %623 = vrot.lane.b32.xlu0 %v573, 8
      %v624 = vpop.permute.xlu0 %623
      %625 = vrot.lane.b32.xlu0 %v576, 8
      %v626 = vpop.permute.xlu0 %625
      %627 = vrot.lane.b32.xlu0 %v580, 8
      %v628 = vpop.permute.xlu0 %627
      %629 = vrot.lane.b32.xlu0 %v583, 8
      %v630 = vpop.permute.xlu0 %629
      %631 = vrot.lane.b32.xlu0 %v587, 8
      %v632 = vpop.permute.xlu0 %631
      %633 = vrot.lane.b32.xlu0 %v590, 8
      %v634 = vpop.permute.xlu0 %633
      %635 = vrot.lane.b32.xlu0 %v594, 8
      %v636 = vpop.permute.xlu0 %635
      %637 = vrot.lane.b32.xlu0 %v597, 8
      %v638 = vpop.permute.xlu0 %637
      %639 = vrot.lane.b32.xlu0 %v601, 8
      %v640 = vpop.permute.xlu0 %639
      %641 = vrot.lane.b32.xlu0 %v604, 8
      %v642 = vpop.permute.xlu0 %641
      %643 = vrot.lane.b32.xlu0 %v608, 8
      %v644 = vpop.permute.xlu0 %643
      %645 = vrot.lane.b32.xlu0 %v611, 8
      %v646 = vpop.permute.xlu0 %645
      %647 = vrot.lane.b32.xlu0 %v615, 8
      %v648 = vpop.permute.xlu0 %647
      %649 = vrot.lane.b32.xlu0 %v618, 8
      %v650 = vpop.permute.xlu0 %649
      %vm667 = vcmask 93248
      %668 = vst.msk [vmem:[#allocation2] sm:$0xf] %vm667, %v620
      %669 = vst.msk [vmem:[#allocation2 + $0x4] sm:$0xf] %vm667, %v622
      %670 = vst.msk [vmem:[#allocation2 + $0x8] sm:$0xf] %vm667, %v624
      %671 = vst.msk [vmem:[#allocation2 + $0xc] sm:$0xf] %vm667, %v626
      %672 = vst.msk [vmem:[#allocation2 + $0x10] sm:$0xf] %vm667, %v628
      %673 = vst.msk [vmem:[#allocation2 + $0x14] sm:$0xf] %vm667, %v630
      %674 = vst.msk [vmem:[#allocation2 + $0x18] sm:$0xf] %vm667, %v632
      %675 = vst.msk [vmem:[#allocation2 + $0x1c] sm:$0xf] %vm667, %v634
      %676 = vst.msk [vmem:[#allocation2 + $0x20] sm:$0xf] %vm667, %v636
      %677 = vst.msk [vmem:[#allocation2 + $0x24] sm:$0xf] %vm667, %v638
      %678 = vst.msk [vmem:[#allocation2 + $0x28] sm:$0xf] %vm667, %v640
      %679 = vst.msk [vmem:[#allocation2 + $0x2c] sm:$0xf] %vm667, %v642
      %680 = vst.msk [vmem:[#allocation2 + $0x30] sm:$0xf] %vm667, %v644
      %681 = vst.msk [vmem:[#allocation2 + $0x34] sm:$0xf] %vm667, %v646
      %682 = vst.msk [vmem:[#allocation2 + $0x38] sm:$0xf] %vm667, %v648
      %683 = vst.msk [vmem:[#allocation2 + $0x3c] sm:$0xf] %vm667, %v650
      %s684 = sadd.s32 %s191, 1
      %s685 = smul.u32 %s684, 3
      %s686 = smul.addr %s685, 4
      %s687 = scalar_lea.vmem %s182, %s686
      %v688 = vld [vmem:[%s687] sm:$0xf]
      %v689 = vld [vmem:[%s687 + $0x4] sm:$0xf]
      %v690 = vld [vmem:[%s687 + $0xc] sm:$0xf]
      %v691 = vld [vmem:[%s687 + $0x10] sm:$0xf]
      %v692 = vld [vmem:[%s687 + $0x18] sm:$0xf]
      %v693 = vld [vmem:[%s687 + $0x1c] sm:$0xf]
      %v694 = vld [vmem:[%s687 + $0x24] sm:$0xf]
      %v695 = vld [vmem:[%s687 + $0x28] sm:$0xf]
      %v696 = vld [vmem:[%s687 + $0x30] sm:$0xf]
      %v697 = vld [vmem:[%s687 + $0x34] sm:$0xf]
      %v698 = vld [vmem:[%s687 + $0x3c] sm:$0xf]
      %v699 = vld [vmem:[%s687 + $0x40] sm:$0xf]
      %v700 = vld [vmem:[%s687 + $0x48] sm:$0xf]
      %v701 = vld [vmem:[%s687 + $0x4c] sm:$0xf]
      %v702 = vld [vmem:[%s687 + $0x54] sm:$0xf]
      %v703 = vld [vmem:[%s687 + $0x58] sm:$0xf]
      %720 = vrot.lane.b32.xlu0 %v688, 12
      %v721 = vpop.permute.xlu0 %720
      %722 = vrot.lane.b32.xlu0 %v689, 12
      %v723 = vpop.permute.xlu0 %722
      %724 = vrot.lane.b32.xlu0 %v690, 12
      %v725 = vpop.permute.xlu0 %724
      %726 = vrot.lane.b32.xlu0 %v691, 12
      %v727 = vpop.permute.xlu0 %726
      %728 = vrot.lane.b32.xlu0 %v692, 12
      %v729 = vpop.permute.xlu0 %728
      %730 = vrot.lane.b32.xlu0 %v693, 12
      %v731 = vpop.permute.xlu0 %730
      %732 = vrot.lane.b32.xlu0 %v694, 12
      %v733 = vpop.permute.xlu0 %732
      %734 = vrot.lane.b32.xlu0 %v695, 12
      %v735 = vpop.permute.xlu0 %734
      %736 = vrot.lane.b32.xlu0 %v696, 12
      %v737 = vpop.permute.xlu0 %736
      %738 = vrot.lane.b32.xlu0 %v697, 12
      %v739 = vpop.permute.xlu0 %738
      %740 = vrot.lane.b32.xlu0 %v698, 12
      %v741 = vpop.permute.xlu0 %740
      %742 = vrot.lane.b32.xlu0 %v699, 12
      %v743 = vpop.permute.xlu0 %742
      %744 = vrot.lane.b32.xlu0 %v700, 12
      %v745 = vpop.permute.xlu0 %744
      %746 = vrot.lane.b32.xlu0 %v701, 12
      %v747 = vpop.permute.xlu0 %746
      %748 = vrot.lane.b32.xlu0 %v702, 12
      %v749 = vpop.permute.xlu0 %748
      %750 = vrot.lane.b32.xlu0 %v703, 12
      %v751 = vpop.permute.xlu0 %750
      %vm768 = vcmask 126048
      %769 = vst.msk [vmem:[#allocation2] sm:$0xf] %vm768, %v721
      %770 = vst.msk [vmem:[#allocation2 + $0x4] sm:$0xf] %vm768, %v723
      %771 = vst.msk [vmem:[#allocation2 + $0x8] sm:$0xf] %vm768, %v725
      %772 = vst.msk [vmem:[#allocation2 + $0xc] sm:$0xf] %vm768, %v727
      %773 = vst.msk [vmem:[#allocation2 + $0x10] sm:$0xf] %vm768, %v729
      %774 = vst.msk [vmem:[#allocation2 + $0x14] sm:$0xf] %vm768, %v731
      %775 = vst.msk [vmem:[#allocation2 + $0x18] sm:$0xf] %vm768, %v733
      %776 = vst.msk [vmem:[#allocation2 + $0x1c] sm:$0xf] %vm768, %v735
      %777 = vst.msk [vmem:[#allocation2 + $0x20] sm:$0xf] %vm768, %v737
      %778 = vst.msk [vmem:[#allocation2 + $0x24] sm:$0xf] %vm768, %v739
      %779 = vst.msk [vmem:[#allocation2 + $0x28] sm:$0xf] %vm768, %v741
      %780 = vst.msk [vmem:[#allocation2 + $0x2c] sm:$0xf] %vm768, %v743
      %781 = vst.msk [vmem:[#allocation2 + $0x30] sm:$0xf] %vm768, %v745
      %782 = vst.msk [vmem:[#allocation2 + $0x34] sm:$0xf] %vm768, %v747
      %783 = vst.msk [vmem:[#allocation2 + $0x38] sm:$0xf] %vm768, %v749
      %784 = vst.msk [vmem:[#allocation2 + $0x3c] sm:$0xf] %vm768, %v751
      %v785 = vld [vmem:[%s687] sm:$0xf]
      %v786 = vld [vmem:[%s687 + $0x4] sm:$0xf]
      %v787 = vld [vmem:[%s687 + $0x8] sm:$0x1]
      %v788 = vld [vmem:[%s687 + $0xc] sm:$0xf]
      %v789 = vld [vmem:[%s687 + $0x10] sm:$0xf]
      %v790 = vld [vmem:[%s687 + $0x14] sm:$0x1]
      %v791 = vld [vmem:[%s687 + $0x18] sm:$0xf]
      %v792 = vld [vmem:[%s687 + $0x1c] sm:$0xf]
      %v793 = vld [vmem:[%s687 + $0x20] sm:$0x1]
      %v794 = vld [vmem:[%s687 + $0x24] sm:$0xf]
      %v795 = vld [vmem:[%s687 + $0x28] sm:$0xf]
      %v796 = vld [vmem:[%s687 + $0x2c] sm:$0x1]
      %v797 = vld [vmem:[%s687 + $0x30] sm:$0xf]
      %v798 = vld [vmem:[%s687 + $0x34] sm:$0xf]
      %v799 = vld [vmem:[%s687 + $0x38] sm:$0x1]
      %v800 = vld [vmem:[%s687 + $0x3c] sm:$0xf]
      %v801 = vld [vmem:[%s687 + $0x40] sm:$0xf]
      %v802 = vld [vmem:[%s687 + $0x44] sm:$0x1]
      %v803 = vld [vmem:[%s687 + $0x48] sm:$0xf]
      %v804 = vld [vmem:[%s687 + $0x4c] sm:$0xf]
      %v805 = vld [vmem:[%s687 + $0x50] sm:$0x1]
      %v806 = vld [vmem:[%s687 + $0x54] sm:$0xf]
      %v807 = vld [vmem:[%s687 + $0x58] sm:$0xf]
      %v808 = vld [vmem:[%s687 + $0x5c] sm:$0x1]
      %v810 = vshrl.u32 %v785, 16
      %v812 = vrot.slane %v810, 4
      %v813 = vshll.u32 %v785, 16
      %v815 = vrot.slane %v813, 5
      %v816 = vor.u32 %v812, %v815
      %v817 = vrot.slane %v816, 4
      %v819 = vshll.u32 %v786, 16
      %v821 = vrot.slane %v819, 5
      %v822 = vsel %vm254, %v817, %v821
      %v823 = vshrl.u32 %v786, 16
      %v825 = vrot.slane %v823, 4
      %v826 = vor.u32 %v825, %v821
      %v827 = vrot.slane %v826, 4
      %v829 = vshll.u32 %v787, 16
      %v831 = vrot.slane %v829, 5
      %v832 = vsel %vm254, %v827, %v831
      %v834 = vshrl.u32 %v788, 16
      %v836 = vrot.slane %v834, 4
      %v837 = vshll.u32 %v788, 16
      %v839 = vrot.slane %v837, 5
      %v840 = vor.u32 %v836, %v839
      %v841 = vrot.slane %v840, 4
      %v843 = vshll.u32 %v789, 16
      %v845 = vrot.slane %v843, 5
      %v846 = vsel %vm254, %v841, %v845
      %v847 = vshrl.u32 %v789, 16
      %v849 = vrot.slane %v847, 4
      %v850 = vor.u32 %v849, %v845
      %v851 = vrot.slane %v850, 4
      %v853 = vshll.u32 %v790, 16
      %v855 = vrot.slane %v853, 5
      %v856 = vsel %vm254, %v851, %v855
      %v858 = vshrl.u32 %v791, 16
      %v860 = vrot.slane %v858, 4
      %v861 = vshll.u32 %v791, 16
      %v863 = vrot.slane %v861, 5
      %v864 = vor.u32 %v860, %v863
      %v865 = vrot.slane %v864, 4
      %v867 = vshll.u32 %v792, 16
      %v869 = vrot.slane %v867, 5
      %v870 = vsel %vm254, %v865, %v869
      %v871 = vshrl.u32 %v792, 16
      %v873 = vrot.slane %v871, 4
      %v874 = vor.u32 %v873, %v869
      %v875 = vrot.slane %v874, 4
      %v877 = vshll.u32 %v793, 16
      %v879 = vrot.slane %v877, 5
      %v880 = vsel %vm254, %v875, %v879
      %v882 = vshrl.u32 %v794, 16
      %v884 = vrot.slane %v882, 4
      %v885 = vshll.u32 %v794, 16
      %v887 = vrot.slane %v885, 5
      %v888 = vor.u32 %v884, %v887
      %v889 = vrot.slane %v888, 4
      %v891 = vshll.u32 %v795, 16
      %v893 = vrot.slane %v891, 5
      %v894 = vsel %vm254, %v889, %v893
      %v895 = vshrl.u32 %v795, 16
      %v897 = vrot.slane %v895, 4
      %v898 = vor.u32 %v897, %v893
      %v899 = vrot.slane %v898, 4
      %v901 = vshll.u32 %v796, 16
      %v903 = vrot.slane %v901, 5
      %v904 = vsel %vm254, %v899, %v903
      %v906 = vshrl.u32 %v797, 16
      %v908 = vrot.slane %v906, 4
      %v909 = vshll.u32 %v797, 16
      %v911 = vrot.slane %v909, 5
      %v912 = vor.u32 %v908, %v911
      %v913 = vrot.slane %v912, 4
      %v915 = vshll.u32 %v798, 16
      %v917 = vrot.slane %v915, 5
      %v918 = vsel %vm254, %v913, %v917
      %v919 = vshrl.u32 %v798, 16
      %v921 = vrot.slane %v919, 4
      %v922 = vor.u32 %v921, %v917
      %v923 = vrot.slane %v922, 4
      %v925 = vshll.u32 %v799, 16
      %v927 = vrot.slane %v925, 5
      %v928 = vsel %vm254, %v923, %v927
      %v930 = vshrl.u32 %v800, 16
      %v932 = vrot.slane %v930, 4
      %v933 = vshll.u32 %v800, 16
      %v935 = vrot.slane %v933, 5
      %v936 = vor.u32 %v932, %v935
      %v937 = vrot.slane %v936, 4
      %v939 = vshll.u32 %v801, 16
      %v941 = vrot.slane %v939, 5
      %v942 = vsel %vm254, %v937, %v941
      %v943 = vshrl.u32 %v801, 16
      %v945 = vrot.slane %v943, 4
      %v946 = vor.u32 %v945, %v941
      %v947 = vrot.slane %v946, 4
      %v949 = vshll.u32 %v802, 16
      %v951 = vrot.slane %v949, 5
      %v952 = vsel %vm254, %v947, %v951
      %v954 = vshrl.u32 %v803, 16
      %v956 = vrot.slane %v954, 4
      %v957 = vshll.u32 %v803, 16
      %v959 = vrot.slane %v957, 5
      %v960 = vor.u32 %v956, %v959
      %v961 = vrot.slane %v960, 4
      %v963 = vshll.u32 %v804, 16
      %v965 = vrot.slane %v963, 5
      %v966 = vsel %vm254, %v961, %v965
      %v967 = vshrl.u32 %v804, 16
      %v969 = vrot.slane %v967, 4
      %v970 = vor.u32 %v969, %v965
      %v971 = vrot.slane %v970, 4
      %v973 = vshll.u32 %v805, 16
      %v975 = vrot.slane %v973, 5
      %v976 = vsel %vm254, %v971, %v975
      %v978 = vshrl.u32 %v806, 16
      %v980 = vrot.slane %v978, 4
      %v981 = vshll.u32 %v806, 16
      %v983 = vrot.slane %v981, 5
      %v984 = vor.u32 %v980, %v983
      %v985 = vrot.slane %v984, 4
      %v987 = vshll.u32 %v807, 16
      %v989 = vrot.slane %v987, 5
      %v990 = vsel %vm254, %v985, %v989
      %v991 = vshrl.u32 %v807, 16
      %v993 = vrot.slane %v991, 4
      %v994 = vor.u32 %v993, %v989
      %v995 = vrot.slane %v994, 4
      %v997 = vshll.u32 %v808, 16
      %v999 = vrot.slane %v997, 5
      %v1000 = vsel %vm254, %v995, %v999
      %1001 = vrot.lane.b32.xlu0 %v822, 16
      %v1002 = vpop.permute.xlu0 %1001
      %1003 = vrot.lane.b32.xlu0 %v832, 16
      %v1004 = vpop.permute.xlu0 %1003
      %1005 = vrot.lane.b32.xlu0 %v846, 16
      %v1006 = vpop.permute.xlu0 %1005
      %1007 = vrot.lane.b32.xlu0 %v856, 16
      %v1008 = vpop.permute.xlu0 %1007
      %1009 = vrot.lane.b32.xlu0 %v870, 16
      %v1010 = vpop.permute.xlu0 %1009
      %1011 = vrot.lane.b32.xlu0 %v880, 16
      %v1012 = vpop.permute.xlu0 %1011
      %1013 = vrot.lane.b32.xlu0 %v894, 16
      %v1014 = vpop.permute.xlu0 %1013
      %1015 = vrot.lane.b32.xlu0 %v904, 16
      %v1016 = vpop.permute.xlu0 %1015
      %1017 = vrot.lane.b32.xlu0 %v918, 16
      %v1018 = vpop.permute.xlu0 %1017
      %1019 = vrot.lane.b32.xlu0 %v928, 16
      %v1020 = vpop.permute.xlu0 %1019
      %1021 = vrot.lane.b32.xlu0 %v942, 16
      %v1022 = vpop.permute.xlu0 %1021
      %1023 = vrot.lane.b32.xlu0 %v952, 16
      %v1024 = vpop.permute.xlu0 %1023
      %1025 = vrot.lane.b32.xlu0 %v966, 16
      %v1026 = vpop.permute.xlu0 %1025
      %1027 = vrot.lane.b32.xlu0 %v976, 16
      %v1028 = vpop.permute.xlu0 %1027
      %1029 = vrot.lane.b32.xlu0 %v990, 16
      %v1030 = vpop.permute.xlu0 %1029
      %1031 = vrot.lane.b32.xlu0 %v1000, 16
      %v1032 = vpop.permute.xlu0 %1031
      %vm1049 = vcmask 158848
      %1050 = vst.msk [vmem:[#allocation2] sm:$0xf] %vm1049, %v1002
      %1051 = vst.msk [vmem:[#allocation2 + $0x4] sm:$0xf] %vm1049, %v1004
      %1052 = vst.msk [vmem:[#allocation2 + $0x8] sm:$0xf] %vm1049, %v1006
      %1053 = vst.msk [vmem:[#allocation2 + $0xc] sm:$0xf] %vm1049, %v1008
      %1054 = vst.msk [vmem:[#allocation2 + $0x10] sm:$0xf] %vm1049, %v1010
      %1055 = vst.msk [vmem:[#allocation2 + $0x14] sm:$0xf] %vm1049, %v1012
      %1056 = vst.msk [vmem:[#allocation2 + $0x18] sm:$0xf] %vm1049, %v1014
      %1057 = vst.msk [vmem:[#allocation2 + $0x1c] sm:$0xf] %vm1049, %v1016
      %1058 = vst.msk [vmem:[#allocation2 + $0x20] sm:$0xf] %vm1049, %v1018
      %1059 = vst.msk [vmem:[#allocation2 + $0x24] sm:$0xf] %vm1049, %v1020
      %1060 = vst.msk [vmem:[#allocation2 + $0x28] sm:$0xf] %vm1049, %v1022
      %1061 = vst.msk [vmem:[#allocation2 + $0x2c] sm:$0xf] %vm1049, %v1024
      %1062 = vst.msk [vmem:[#allocation2 + $0x30] sm:$0xf] %vm1049, %v1026
      %1063 = vst.msk [vmem:[#allocation2 + $0x34] sm:$0xf] %vm1049, %v1028
      %1064 = vst.msk [vmem:[#allocation2 + $0x38] sm:$0xf] %vm1049, %v1030
      %1065 = vst.msk [vmem:[#allocation2 + $0x3c] sm:$0xf] %vm1049, %v1032
      %v1066 = vld [vmem:[%s687] sm:$0xe]
      %v1067 = vld [vmem:[%s687 + $0x4] sm:$0xf]
      %v1068 = vld [vmem:[%s687 + $0x8] sm:$0x1]
      %v1069 = vld [vmem:[%s687 + $0xc] sm:$0xe]
      %v1070 = vld [vmem:[%s687 + $0x10] sm:$0xf]
      %v1071 = vld [vmem:[%s687 + $0x14] sm:$0x1]
      %v1072 = vld [vmem:[%s687 + $0x18] sm:$0xe]
      %v1073 = vld [vmem:[%s687 + $0x1c] sm:$0xf]
      %v1074 = vld [vmem:[%s687 + $0x20] sm:$0x1]
      %v1075 = vld [vmem:[%s687 + $0x24] sm:$0xe]
      %v1076 = vld [vmem:[%s687 + $0x28] sm:$0xf]
      %v1077 = vld [vmem:[%s687 + $0x2c] sm:$0x1]
      %v1078 = vld [vmem:[%s687 + $0x30] sm:$0xe]
      %v1079 = vld [vmem:[%s687 + $0x34] sm:$0xf]
      %v1080 = vld [vmem:[%s687 + $0x38] sm:$0x1]
      %v1081 = vld [vmem:[%s687 + $0x3c] sm:$0xe]
      %v1082 = vld [vmem:[%s687 + $0x40] sm:$0xf]
      %v1083 = vld [vmem:[%s687 + $0x44] sm:$0x1]
      %v1084 = vld [vmem:[%s687 + $0x48] sm:$0xe]
      %v1085 = vld [vmem:[%s687 + $0x4c] sm:$0xf]
      %v1086 = vld [vmem:[%s687 + $0x50] sm:$0x1]
      %v1087 = vld [vmem:[%s687 + $0x54] sm:$0xe]
      %v1088 = vld [vmem:[%s687 + $0x58] sm:$0xf]
      %v1089 = vld [vmem:[%s687 + $0x5c] sm:$0x1]
      %v1114 = vrot.slane %v1066, 5
      %v1115 = vrot.slane %v1114, 4
      %v1116 = vrot.slane %v1067, 5
      %v1117 = vsel %vm562, %v1115, %v1116
      %v1118 = vrot.slane %v1116, 4
      %v1119 = vrot.slane %v1068, 5
      %v1120 = vsel %vm562, %v1118, %v1119
      %v1121 = vrot.slane %v1069, 5
      %v1122 = vrot.slane %v1121, 4
      %v1123 = vrot.slane %v1070, 5
      %v1124 = vsel %vm562, %v1122, %v1123
      %v1125 = vrot.slane %v1123, 4
      %v1126 = vrot.slane %v1071, 5
      %v1127 = vsel %vm562, %v1125, %v1126
      %v1128 = vrot.slane %v1072, 5
      %v1129 = vrot.slane %v1128, 4
      %v1130 = vrot.slane %v1073, 5
      %v1131 = vsel %vm562, %v1129, %v1130
      %v1132 = vrot.slane %v1130, 4
      %v1133 = vrot.slane %v1074, 5
      %v1134 = vsel %vm562, %v1132, %v1133
      %v1135 = vrot.slane %v1075, 5
      %v1136 = vrot.slane %v1135, 4
      %v1137 = vrot.slane %v1076, 5
      %v1138 = vsel %vm562, %v1136, %v1137
      %v1139 = vrot.slane %v1137, 4
      %v1140 = vrot.slane %v1077, 5
      %v1141 = vsel %vm562, %v1139, %v1140
      %v1142 = vrot.slane %v1078, 5
      %v1143 = vrot.slane %v1142, 4
      %v1144 = vrot.slane %v1079, 5
      %v1145 = vsel %vm562, %v1143, %v1144
      %v1146 = vrot.slane %v1144, 4
      %v1147 = vrot.slane %v1080, 5
      %v1148 = vsel %vm562, %v1146, %v1147
      %v1149 = vrot.slane %v1081, 5
      %v1150 = vrot.slane %v1149, 4
      %v1151 = vrot.slane %v1082, 5
      %v1152 = vsel %vm562, %v1150, %v1151
      %v1153 = vrot.slane %v1151, 4
      %v1154 = vrot.slane %v1083, 5
      %v1155 = vsel %vm562, %v1153, %v1154
      %v1156 = vrot.slane %v1084, 5
      %v1157 = vrot.slane %v1156, 4
      %v1158 = vrot.slane %v1085, 5
      %v1159 = vsel %vm562, %v1157, %v1158
      %v1160 = vrot.slane %v1158, 4
      %v1161 = vrot.slane %v1086, 5
      %v1162 = vsel %vm562, %v1160, %v1161
      %v1163 = vrot.slane %v1087, 5
      %v1164 = vrot.slane %v1163, 4
      %v1165 = vrot.slane %v1088, 5
      %v1166 = vsel %vm562, %v1164, %v1165
      %v1167 = vrot.slane %v1165, 4
      %v1168 = vrot.slane %v1089, 5
      %v1169 = vsel %vm562, %v1167, %v1168
      %1170 = vrot.lane.b32.xlu0 %v1117, 20
      %v1171 = vpop.permute.xlu0 %1170
      %1172 = vrot.lane.b32.xlu0 %v1120, 20
      %v1173 = vpop.permute.xlu0 %1172
      %1174 = vrot.lane.b32.xlu0 %v1124, 20
      %v1175 = vpop.permute.xlu0 %1174
      %1176 = vrot.lane.b32.xlu0 %v1127, 20
      %v1177 = vpop.permute.xlu0 %1176
      %1178 = vrot.lane.b32.xlu0 %v1131, 20
      %v1179 = vpop.permute.xlu0 %1178
      %1180 = vrot.lane.b32.xlu0 %v1134, 20
      %v1181 = vpop.permute.xlu0 %1180
      %1182 = vrot.lane.b32.xlu0 %v1138, 20
      %v1183 = vpop.permute.xlu0 %1182
      %1184 = vrot.lane.b32.xlu0 %v1141, 20
      %v1185 = vpop.permute.xlu0 %1184
      %1186 = vrot.lane.b32.xlu0 %v1145, 20
      %v1187 = vpop.permute.xlu0 %1186
      %1188 = vrot.lane.b32.xlu0 %v1148, 20
      %v1189 = vpop.permute.xlu0 %1188
      %1190 = vrot.lane.b32.xlu0 %v1152, 20
      %v1191 = vpop.permute.xlu0 %1190
      %1192 = vrot.lane.b32.xlu0 %v1155, 20
      %v1193 = vpop.permute.xlu0 %1192
      %1194 = vrot.lane.b32.xlu0 %v1159, 20
      %v1195 = vpop.permute.xlu0 %1194
      %1196 = vrot.lane.b32.xlu0 %v1162, 20
      %v1197 = vpop.permute.xlu0 %1196
      %1198 = vrot.lane.b32.xlu0 %v1166, 20
      %v1199 = vpop.permute.xlu0 %1198
      %1200 = vrot.lane.b32.xlu0 %v1169, 20
      %v1201 = vpop.permute.xlu0 %1200
      %vm1218 = vcmask 191648
      %1219 = vst.msk [vmem:[#allocation2] sm:$0xf] %vm1218, %v1171
      %1220 = vst.msk [vmem:[#allocation2 + $0x4] sm:$0xf] %vm1218, %v1173
      %1221 = vst.msk [vmem:[#allocation2 + $0x8] sm:$0xf] %vm1218, %v1175
      %1222 = vst.msk [vmem:[#allocation2 + $0xc] sm:$0xf] %vm1218, %v1177
      %1223 = vst.msk [vmem:[#allocation2 + $0x10] sm:$0xf] %vm1218, %v1179
      %1224 = vst.msk [vmem:[#allocation2 + $0x14] sm:$0xf] %vm1218, %v1181
      %1225 = vst.msk [vmem:[#allocation2 + $0x18] sm:$0xf] %vm1218, %v1183
      %1226 = vst.msk [vmem:[#allocation2 + $0x1c] sm:$0xf] %vm1218, %v1185
      %1227 = vst.msk [vmem:[#allocation2 + $0x20] sm:$0xf] %vm1218, %v1187
      %1228 = vst.msk [vmem:[#allocation2 + $0x24] sm:$0xf] %vm1218, %v1189
      %1229 = vst.msk [vmem:[#allocation2 + $0x28] sm:$0xf] %vm1218, %v1191
      %1230 = vst.msk [vmem:[#allocation2 + $0x2c] sm:$0xf] %vm1218, %v1193
      %1231 = vst.msk [vmem:[#allocation2 + $0x30] sm:$0xf] %vm1218, %v1195
      %1232 = vst.msk [vmem:[#allocation2 + $0x34] sm:$0xf] %vm1218, %v1197
      %1233 = vst.msk [vmem:[#allocation2 + $0x38] sm:$0xf] %vm1218, %v1199
      %1234 = vst.msk [vmem:[#allocation2 + $0x3c] sm:$0xf] %vm1218, %v1201
      %s1235 = sadd.s32 %s191, 2
      %s1236 = smul.u32 %s1235, 3
      %s1237 = smul.addr %s1236, 4
      %s1238 = scalar_lea.vmem %s182, %s1237
      %v1239 = vld [vmem:[%s1238] sm:$0xf]
      %v1240 = vld [vmem:[%s1238 + $0x4] sm:$0xf]
      %v1241 = vld [vmem:[%s1238 + $0xc] sm:$0xf]
      %v1242 = vld [vmem:[%s1238 + $0x10] sm:$0xf]
      %v1243 = vld [vmem:[%s1238 + $0x18] sm:$0xf]
      %v1244 = vld [vmem:[%s1238 + $0x1c] sm:$0xf]
      %v1245 = vld [vmem:[%s1238 + $0x24] sm:$0xf]
      %v1246 = vld [vmem:[%s1238 + $0x28] sm:$0xf]
      %v1247 = vld [vmem:[%s1238 + $0x30] sm:$0xf]
      %v1248 = vld [vmem:[%s1238 + $0x34] sm:$0xf]
      %v1249 = vld [vmem:[%s1238 + $0x3c] sm:$0xf]
      %v1250 = vld [vmem:[%s1238 + $0x40] sm:$0xf]
      %v1251 = vld [vmem:[%s1238 + $0x48] sm:$0xf]
      %v1252 = vld [vmem:[%s1238 + $0x4c] sm:$0xf]
      %v1253 = vld [vmem:[%s1238 + $0x54] sm:$0xf]
      %v1254 = vld [vmem:[%s1238 + $0x58] sm:$0xf]
      %1271 = vrot.lane.b32.xlu0 %v1239, 24
      %v1272 = vpop.permute.xlu0 %1271
      %1273 = vrot.lane.b32.xlu0 %v1240, 24
      %v1274 = vpop.permute.xlu0 %1273
      %1275 = vrot.lane.b32.xlu0 %v1241, 24
      %v1276 = vpop.permute.xlu0 %1275
      %1277 = vrot.lane.b32.xlu0 %v1242, 24
      %v1278 = vpop.permute.xlu0 %1277
      %1279 = vrot.lane.b32.xlu0 %v1243, 24
      %v1280 = vpop.permute.xlu0 %1279
      %1281 = vrot.lane.b32.xlu0 %v1244, 24
      %v1282 = vpop.permute.xlu0 %1281
      %1283 = vrot.lane.b32.xlu0 %v1245, 24
      %v1284 = vpop.permute.xlu0 %1283
      %1285 = vrot.lane.b32.xlu0 %v1246, 24
      %v1286 = vpop.permute.xlu0 %1285
      %1287 = vrot.lane.b32.xlu0 %v1247, 24
      %v1288 = vpop.permute.xlu0 %1287
      %1289 = vrot.lane.b32.xlu0 %v1248, 24
      %v1290 = vpop.permute.xlu0 %1289
      %1291 = vrot.lane.b32.xlu0 %v1249, 24
      %v1292 = vpop.permute.xlu0 %1291
      %1293 = vrot.lane.b32.xlu0 %v1250, 24
      %v1294 = vpop.permute.xlu0 %1293
      %1295 = vrot.lane.b32.xlu0 %v1251, 24
      %v1296 = vpop.permute.xlu0 %1295
      %1297 = vrot.lane.b32.xlu0 %v1252, 24
      %v1298 = vpop.permute.xlu0 %1297
      %1299 = vrot.lane.b32.xlu0 %v1253, 24
      %v1300 = vpop.permute.xlu0 %1299
      %1301 = vrot.lane.b32.xlu0 %v1254, 24
      %v1302 = vpop.permute.xlu0 %1301
      %vm1319 = vcmask 224448
      %1320 = vst.msk [vmem:[#allocation2] sm:$0xf] %vm1319, %v1272
      %1321 = vst.msk [vmem:[#allocation2 + $0x4] sm:$0xf] %vm1319, %v1274
      %1322 = vst.msk [vmem:[#allocation2 + $0x8] sm:$0xf] %vm1319, %v1276
      %1323 = vst.msk [vmem:[#allocation2 + $0xc] sm:$0xf] %vm1319, %v1278
      %1324 = vst.msk [vmem:[#allocation2 + $0x10] sm:$0xf] %vm1319, %v1280
      %1325 = vst.msk [vmem:[#allocation2 + $0x14] sm:$0xf] %vm1319, %v1282
      %1326 = vst.msk [vmem:[#allocation2 + $0x18] sm:$0xf] %vm1319, %v1284
      %1327 = vst.msk [vmem:[#allocation2 + $0x1c] sm:$0xf] %vm1319, %v1286
      %1328 = vst.msk [vmem:[#allocation2 + $0x20] sm:$0xf] %vm1319, %v1288
      %1329 = vst.msk [vmem:[#allocation2 + $0x24] sm:$0xf] %vm1319, %v1290
      %1330 = vst.msk [vmem:[#allocation2 + $0x28] sm:$0xf] %vm1319, %v1292
      %1331 = vst.msk [vmem:[#allocation2 + $0x2c] sm:$0xf] %vm1319, %v1294
      %1332 = vst.msk [vmem:[#allocation2 + $0x30] sm:$0xf] %vm1319, %v1296
      %1333 = vst.msk [vmem:[#allocation2 + $0x34] sm:$0xf] %vm1319, %v1298
      %1334 = vst.msk [vmem:[#allocation2 + $0x38] sm:$0xf] %vm1319, %v1300
      %1335 = vst.msk [vmem:[#allocation2 + $0x3c] sm:$0xf] %vm1319, %v1302
      %v1336 = vld [vmem:[%s1238] sm:$0xf]
      %v1337 = vld [vmem:[%s1238 + $0x4] sm:$0xf]
      %v1338 = vld [vmem:[%s1238 + $0x8] sm:$0x1]
      %v1339 = vld [vmem:[%s1238 + $0xc] sm:$0xf]
      %v1340 = vld [vmem:[%s1238 + $0x10] sm:$0xf]
      %v1341 = vld [vmem:[%s1238 + $0x14] sm:$0x1]
      %v1342 = vld [vmem:[%s1238 + $0x18] sm:$0xf]
      %v1343 = vld [vmem:[%s1238 + $0x1c] sm:$0xf]
      %v1344 = vld [vmem:[%s1238 + $0x20] sm:$0x1]
      %v1345 = vld [vmem:[%s1238 + $0x24] sm:$0xf]
      %v1346 = vld [vmem:[%s1238 + $0x28] sm:$0xf]
      %v1347 = vld [vmem:[%s1238 + $0x2c] sm:$0x1]
      %v1348 = vld [vmem:[%s1238 + $0x30] sm:$0xf]
      %v1349 = vld [vmem:[%s1238 + $0x34] sm:$0xf]
      %v1350 = vld [vmem:[%s1238 + $0x38] sm:$0x1]
      %v1351 = vld [vmem:[%s1238 + $0x3c] sm:$0xf]
      %v1352 = vld [vmem:[%s1238 + $0x40] sm:$0xf]
      %v1353 = vld [vmem:[%s1238 + $0x44] sm:$0x1]
      %v1354 = vld [vmem:[%s1238 + $0x48] sm:$0xf]
      %v1355 = vld [vmem:[%s1238 + $0x4c] sm:$0xf]
      %v1356 = vld [vmem:[%s1238 + $0x50] sm:$0x1]
      %v1357 = vld [vmem:[%s1238 + $0x54] sm:$0xf]
      %v1358 = vld [vmem:[%s1238 + $0x58] sm:$0xf]
      %v1359 = vld [vmem:[%s1238 + $0x5c] sm:$0x1]
      %v1361 = vshrl.u32 %v1336, 16
      %v1363 = vrot.slane %v1361, 4
      %v1364 = vshll.u32 %v1336, 16
      %v1366 = vrot.slane %v1364, 5
      %v1367 = vor.u32 %v1363, %v1366
      %v1368 = vrot.slane %v1367, 4
      %v1370 = vshll.u32 %v1337, 16
      %v1372 = vrot.slane %v1370, 5
      %v1373 = vsel %vm254, %v1368, %v1372
      %v1374 = vshrl.u32 %v1337, 16
      %v1376 = vrot.slane %v1374, 4
      %v1377 = vor.u32 %v1376, %v1372
      %v1378 = vrot.slane %v1377, 4
      %v1380 = vshll.u32 %v1338, 16
      %v1382 = vrot.slane %v1380, 5
      %v1383 = vsel %vm254, %v1378, %v1382
      %v1385 = vshrl.u32 %v1339, 16
      %v1387 = vrot.slane %v1385, 4
      %v1388 = vshll.u32 %v1339, 16
      %v1390 = vrot.slane %v1388, 5
      %v1391 = vor.u32 %v1387, %v1390
      %v1392 = vrot.slane %v1391, 4
      %v1394 = vshll.u32 %v1340, 16
      %v1396 = vrot.slane %v1394, 5
      %v1397 = vsel %vm254, %v1392, %v1396
      %v1398 = vshrl.u32 %v1340, 16
      %v1400 = vrot.slane %v1398, 4
      %v1401 = vor.u32 %v1400, %v1396
      %v1402 = vrot.slane %v1401, 4
      %v1404 = vshll.u32 %v1341, 16
      %v1406 = vrot.slane %v1404, 5
      %v1407 = vsel %vm254, %v1402, %v1406
      %v1409 = vshrl.u32 %v1342, 16
      %v1411 = vrot.slane %v1409, 4
      %v1412 = vshll.u32 %v1342, 16
      %v1414 = vrot.slane %v1412, 5
      %v1415 = vor.u32 %v1411, %v1414
      %v1416 = vrot.slane %v1415, 4
      %v1418 = vshll.u32 %v1343, 16
      %v1420 = vrot.slane %v1418, 5
      %v1421 = vsel %vm254, %v1416, %v1420
      %v1422 = vshrl.u32 %v1343, 16
      %v1424 = vrot.slane %v1422, 4
      %v1425 = vor.u32 %v1424, %v1420
      %v1426 = vrot.slane %v1425, 4
      %v1428 = vshll.u32 %v1344, 16
      %v1430 = vrot.slane %v1428, 5
      %v1431 = vsel %vm254, %v1426, %v1430
      %v1433 = vshrl.u32 %v1345, 16
      %v1435 = vrot.slane %v1433, 4
      %v1436 = vshll.u32 %v1345, 16
      %v1438 = vrot.slane %v1436, 5
      %v1439 = vor.u32 %v1435, %v1438
      %v1440 = vrot.slane %v1439, 4
      %v1442 = vshll.u32 %v1346, 16
      %v1444 = vrot.slane %v1442, 5
      %v1445 = vsel %vm254, %v1440, %v1444
      %v1446 = vshrl.u32 %v1346, 16
      %v1448 = vrot.slane %v1446, 4
      %v1449 = vor.u32 %v1448, %v1444
      %v1450 = vrot.slane %v1449, 4
      %v1452 = vshll.u32 %v1347, 16
      %v1454 = vrot.slane %v1452, 5
      %v1455 = vsel %vm254, %v1450, %v1454
      %v1457 = vshrl.u32 %v1348, 16
      %v1459 = vrot.slane %v1457, 4
      %v1460 = vshll.u32 %v1348, 16
      %v1462 = vrot.slane %v1460, 5
      %v1463 = vor.u32 %v1459, %v1462
      %v1464 = vrot.slane %v1463, 4
      %v1466 = vshll.u32 %v1349, 16
      %v1468 = vrot.slane %v1466, 5
      %v1469 = vsel %vm254, %v1464, %v1468
      %v1470 = vshrl.u32 %v1349, 16
      %v1472 = vrot.slane %v1470, 4
      %v1473 = vor.u32 %v1472, %v1468
      %v1474 = vrot.slane %v1473, 4
      %v1476 = vshll.u32 %v1350, 16
      %v1478 = vrot.slane %v1476, 5
      %v1479 = vsel %vm254, %v1474, %v1478
      %v1481 = vshrl.u32 %v1351, 16
      %v1483 = vrot.slane %v1481, 4
      %v1484 = vshll.u32 %v1351, 16
      %v1486 = vrot.slane %v1484, 5
      %v1487 = vor.u32 %v1483, %v1486
      %v1488 = vrot.slane %v1487, 4
      %v1490 = vshll.u32 %v1352, 16
      %v1492 = vrot.slane %v1490, 5
      %v1493 = vsel %vm254, %v1488, %v1492
      %v1494 = vshrl.u32 %v1352, 16
      %v1496 = vrot.slane %v1494, 4
      %v1497 = vor.u32 %v1496, %v1492
      %v1498 = vrot.slane %v1497, 4
      %v1500 = vshll.u32 %v1353, 16
      %v1502 = vrot.slane %v1500, 5
      %v1503 = vsel %vm254, %v1498, %v1502
      %v1505 = vshrl.u32 %v1354, 16
      %v1507 = vrot.slane %v1505, 4
      %v1508 = vshll.u32 %v1354, 16
      %v1510 = vrot.slane %v1508, 5
      %v1511 = vor.u32 %v1507, %v1510
      %v1512 = vrot.slane %v1511, 4
      %v1514 = vshll.u32 %v1355, 16
      %v1516 = vrot.slane %v1514, 5
      %v1517 = vsel %vm254, %v1512, %v1516
      %v1518 = vshrl.u32 %v1355, 16
      %v1520 = vrot.slane %v1518, 4
      %v1521 = vor.u32 %v1520, %v1516
      %v1522 = vrot.slane %v1521, 4
      %v1524 = vshll.u32 %v1356, 16
      %v1526 = vrot.slane %v1524, 5
      %v1527 = vsel %vm254, %v1522, %v1526
      %v1529 = vshrl.u32 %v1357, 16
      %v1531 = vrot.slane %v1529, 4
      %v1532 = vshll.u32 %v1357, 16
      %v1534 = vrot.slane %v1532, 5
      %v1535 = vor.u32 %v1531, %v1534
      %v1536 = vrot.slane %v1535, 4
      %v1538 = vshll.u32 %v1358, 16
      %v1540 = vrot.slane %v1538, 5
      %v1541 = vsel %vm254, %v1536, %v1540
      %v1542 = vshrl.u32 %v1358, 16
      %v1544 = vrot.slane %v1542, 4
      %v1545 = vor.u32 %v1544, %v1540
      %v1546 = vrot.slane %v1545, 4
      %v1548 = vshll.u32 %v1359, 16
      %v1550 = vrot.slane %v1548, 5
      %v1551 = vsel %vm254, %v1546, %v1550
      %1552 = vrot.lane.b32.xlu0 %v1373, 28
      %v1553 = vpop.permute.xlu0 %1552
      %1554 = vrot.lane.b32.xlu0 %v1383, 28
      %v1555 = vpop.permute.xlu0 %1554
      %1556 = vrot.lane.b32.xlu0 %v1397, 28
      %v1557 = vpop.permute.xlu0 %1556
      %1558 = vrot.lane.b32.xlu0 %v1407, 28
      %v1559 = vpop.permute.xlu0 %1558
      %1560 = vrot.lane.b32.xlu0 %v1421, 28
      %v1561 = vpop.permute.xlu0 %1560
      %1562 = vrot.lane.b32.xlu0 %v1431, 28
      %v1563 = vpop.permute.xlu0 %1562
      %1564 = vrot.lane.b32.xlu0 %v1445, 28
      %v1565 = vpop.permute.xlu0 %1564
      %1566 = vrot.lane.b32.xlu0 %v1455, 28
      %v1567 = vpop.permute.xlu0 %1566
      %1568 = vrot.lane.b32.xlu0 %v1469, 28
      %v1569 = vpop.permute.xlu0 %1568
      %1570 = vrot.lane.b32.xlu0 %v1479, 28
      %v1571 = vpop.permute.xlu0 %1570
      %1572 = vrot.lane.b32.xlu0 %v1493, 28
      %v1573 = vpop.permute.xlu0 %1572
      %1574 = vrot.lane.b32.xlu0 %v1503, 28
      %v1575 = vpop.permute.xlu0 %1574
      %1576 = vrot.lane.b32.xlu0 %v1517, 28
      %v1577 = vpop.permute.xlu0 %1576
      %1578 = vrot.lane.b32.xlu0 %v1527, 28
      %v1579 = vpop.permute.xlu0 %1578
      %1580 = vrot.lane.b32.xlu0 %v1541, 28
      %v1581 = vpop.permute.xlu0 %1580
      %1582 = vrot.lane.b32.xlu0 %v1551, 28
      %v1583 = vpop.permute.xlu0 %1582
      %vm1600 = vcmask 257248
      %1601 = vst.msk [vmem:[#allocation2] sm:$0xf] %vm1600, %v1553
      %1602 = vst.msk [vmem:[#allocation2 + $0x4] sm:$0xf] %vm1600, %v1555
      %1603 = vst.msk [vmem:[#allocation2 + $0x8] sm:$0xf] %vm1600, %v1557
      %1604 = vst.msk [vmem:[#allocation2 + $0xc] sm:$0xf] %vm1600, %v1559
      %1605 = vst.msk [vmem:[#allocation2 + $0x10] sm:$0xf] %vm1600, %v1561
      %1606 = vst.msk [vmem:[#allocation2 + $0x14] sm:$0xf] %vm1600, %v1563
      %1607 = vst.msk [vmem:[#allocation2 + $0x18] sm:$0xf] %vm1600, %v1565
      %1608 = vst.msk [vmem:[#allocation2 + $0x1c] sm:$0xf] %vm1600, %v1567
      %1609 = vst.msk [vmem:[#allocation2 + $0x20] sm:$0xf] %vm1600, %v1569
      %1610 = vst.msk [vmem:[#allocation2 + $0x24] sm:$0xf] %vm1600, %v1571
      %1611 = vst.msk [vmem:[#allocation2 + $0x28] sm:$0xf] %vm1600, %v1573
      %1612 = vst.msk [vmem:[#allocation2 + $0x2c] sm:$0xf] %vm1600, %v1575
      %1613 = vst.msk [vmem:[#allocation2 + $0x30] sm:$0xf] %vm1600, %v1577
      %1614 = vst.msk [vmem:[#allocation2 + $0x34] sm:$0xf] %vm1600, %v1579
      %1615 = vst.msk [vmem:[#allocation2 + $0x38] sm:$0xf] %vm1600, %v1581
      %1616 = vst.msk [vmem:[#allocation2 + $0x3c] sm:$0xf] %vm1600, %v1583
      %v1617 = vld [vmem:[%s1238] sm:$0xe]
      %v1618 = vld [vmem:[%s1238 + $0x4] sm:$0xf]
      %v1619 = vld [vmem:[%s1238 + $0x8] sm:$0x1]
      %v1620 = vld [vmem:[%s1238 + $0xc] sm:$0xe]
      %v1621 = vld [vmem:[%s1238 + $0x10] sm:$0xf]
      %v1622 = vld [vmem:[%s1238 + $0x14] sm:$0x1]
      %v1623 = vld [vmem:[%s1238 + $0x18] sm:$0xe]
      %v1624 = vld [vmem:[%s1238 + $0x1c] sm:$0xf]
      %v1625 = vld [vmem:[%s1238 + $0x20] sm:$0x1]
      %v1626 = vld [vmem:[%s1238 + $0x24] sm:$0xe]
      %v1627 = vld [vmem:[%s1238 + $0x28] sm:$0xf]
      %v1628 = vld [vmem:[%s1238 + $0x2c] sm:$0x1]
      %v1629 = vld [vmem:[%s1238 + $0x30] sm:$0xe]
      %v1630 = vld [vmem:[%s1238 + $0x34] sm:$0xf]
      %v1631 = vld [vmem:[%s1238 + $0x38] sm:$0x1]
      %v1632 = vld [vmem:[%s1238 + $0x3c] sm:$0xe]
      %v1633 = vld [vmem:[%s1238 + $0x40] sm:$0xf]
      %v1634 = vld [vmem:[%s1238 + $0x44] sm:$0x1]
      %v1635 = vld [vmem:[%s1238 + $0x48] sm:$0xe]
      %v1636 = vld [vmem:[%s1238 + $0x4c] sm:$0xf]
      %v1637 = vld [vmem:[%s1238 + $0x50] sm:$0x1]
      %v1638 = vld [vmem:[%s1238 + $0x54] sm:$0xe]
      %v1639 = vld [vmem:[%s1238 + $0x58] sm:$0xf]
      %v1640 = vld [vmem:[%s1238 + $0x5c] sm:$0x1]
      %v1665 = vrot.slane %v1617, 5
      %v1666 = vrot.slane %v1665, 4
      %v1667 = vrot.slane %v1618, 5
      %v1668 = vsel %vm562, %v1666, %v1667
      %v1669 = vrot.slane %v1667, 4
      %v1670 = vrot.slane %v1619, 5
      %v1671 = vsel %vm562, %v1669, %v1670
      %v1672 = vrot.slane %v1620, 5
      %v1673 = vrot.slane %v1672, 4
      %v1674 = vrot.slane %v1621, 5
      %v1675 = vsel %vm562, %v1673, %v1674
      %v1676 = vrot.slane %v1674, 4
      %v1677 = vrot.slane %v1622, 5
      %v1678 = vsel %vm562, %v1676, %v1677
      %v1679 = vrot.slane %v1623, 5
      %v1680 = vrot.slane %v1679, 4
      %v1681 = vrot.slane %v1624, 5
      %v1682 = vsel %vm562, %v1680, %v1681
      %v1683 = vrot.slane %v1681, 4
      %v1684 = vrot.slane %v1625, 5
      %v1685 = vsel %vm562, %v1683, %v1684
      %v1686 = vrot.slane %v1626, 5
      %v1687 = vrot.slane %v1686, 4
      %v1688 = vrot.slane %v1627, 5
      %v1689 = vsel %vm562, %v1687, %v1688
      %v1690 = vrot.slane %v1688, 4
      %v1691 = vrot.slane %v1628, 5
      %v1692 = vsel %vm562, %v1690, %v1691
      %v1693 = vrot.slane %v1629, 5
      %v1694 = vrot.slane %v1693, 4
      %v1695 = vrot.slane %v1630, 5
      %v1696 = vsel %vm562, %v1694, %v1695
      %v1697 = vrot.slane %v1695, 4
      %v1698 = vrot.slane %v1631, 5
      %v1699 = vsel %vm562, %v1697, %v1698
      %v1700 = vrot.slane %v1632, 5
      %v1701 = vrot.slane %v1700, 4
      %v1702 = vrot.slane %v1633, 5
      %v1703 = vsel %vm562, %v1701, %v1702
      %v1704 = vrot.slane %v1702, 4
      %v1705 = vrot.slane %v1634, 5
      %v1706 = vsel %vm562, %v1704, %v1705
      %v1707 = vrot.slane %v1635, 5
      %v1708 = vrot.slane %v1707, 4
      %v1709 = vrot.slane %v1636, 5
      %v1710 = vsel %vm562, %v1708, %v1709
      %v1711 = vrot.slane %v1709, 4
      %v1712 = vrot.slane %v1637, 5
      %v1713 = vsel %vm562, %v1711, %v1712
      %v1714 = vrot.slane %v1638, 5
      %v1715 = vrot.slane %v1714, 4
      %v1716 = vrot.slane %v1639, 5
      %v1717 = vsel %vm562, %v1715, %v1716
      %v1718 = vrot.slane %v1716, 4
      %v1719 = vrot.slane %v1640, 5
      %v1720 = vsel %vm562, %v1718, %v1719
      %1721 = vrot.lane.b32.xlu0 %v1668, 32
      %v1722 = vpop.permute.xlu0 %1721
      %1723 = vrot.lane.b32.xlu0 %v1671, 32
      %v1724 = vpop.permute.xlu0 %1723
      %1725 = vrot.lane.b32.xlu0 %v1675, 32
      %v1726 = vpop.permute.xlu0 %1725
      %1727 = vrot.lane.b32.xlu0 %v1678, 32
      %v1728 = vpop.permute.xlu0 %1727
      %1729 = vrot.lane.b32.xlu0 %v1682, 32
      %v1730 = vpop.permute.xlu0 %1729
      %1731 = vrot.lane.b32.xlu0 %v1685, 32
      %v1732 = vpop.permute.xlu0 %1731
      %1733 = vrot.lane.b32.xlu0 %v1689, 32
      %v1734 = vpop.permute.xlu0 %1733
      %1735 = vrot.lane.b32.xlu0 %v1692, 32
      %v1736 = vpop.permute.xlu0 %1735
      %1737 = vrot.lane.b32.xlu0 %v1696, 32
      %v1738 = vpop.permute.xlu0 %1737
      %1739 = vrot.lane.b32.xlu0 %v1699, 32
      %v1740 = vpop.permute.xlu0 %1739
      %1741 = vrot.lane.b32.xlu0 %v1703, 32
      %v1742 = vpop.permute.xlu0 %1741
      %1743 = vrot.lane.b32.xlu0 %v1706, 32
      %v1744 = vpop.permute.xlu0 %1743
      %1745 = vrot.lane.b32.xlu0 %v1710, 32
      %v1746 = vpop.permute.xlu0 %1745
      %1747 = vrot.lane.b32.xlu0 %v1713, 32
      %v1748 = vpop.permute.xlu0 %1747
      %1749 = vrot.lane.b32.xlu0 %v1717, 32
      %v1750 = vpop.permute.xlu0 %1749
      %1751 = vrot.lane.b32.xlu0 %v1720, 32
      %v1752 = vpop.permute.xlu0 %1751
      %vm1769 = vcmask 290048
      %1770 = vst.msk [vmem:[#allocation2] sm:$0xf] %vm1769, %v1722
      %1771 = vst.msk [vmem:[#allocation2 + $0x4] sm:$0xf] %vm1769, %v1724
      %1772 = vst.msk [vmem:[#allocation2 + $0x8] sm:$0xf] %vm1769, %v1726
      %1773 = vst.msk [vmem:[#allocation2 + $0xc] sm:$0xf] %vm1769, %v1728
      %1774 = vst.msk [vmem:[#allocation2 + $0x10] sm:$0xf] %vm1769, %v1730
      %1775 = vst.msk [vmem:[#allocation2 + $0x14] sm:$0xf] %vm1769, %v1732
      %1776 = vst.msk [vmem:[#allocation2 + $0x18] sm:$0xf] %vm1769, %v1734
      %1777 = vst.msk [vmem:[#allocation2 + $0x1c] sm:$0xf] %vm1769, %v1736
      %1778 = vst.msk [vmem:[#allocation2 + $0x20] sm:$0xf] %vm1769, %v1738
      %1779 = vst.msk [vmem:[#allocation2 + $0x24] sm:$0xf] %vm1769, %v1740
      %1780 = vst.msk [vmem:[#allocation2 + $0x28] sm:$0xf] %vm1769, %v1742
      %1781 = vst.msk [vmem:[#allocation2 + $0x2c] sm:$0xf] %vm1769, %v1744
      %1782 = vst.msk [vmem:[#allocation2 + $0x30] sm:$0xf] %vm1769, %v1746
      %1783 = vst.msk [vmem:[#allocation2 + $0x34] sm:$0xf] %vm1769, %v1748
      %1784 = vst.msk [vmem:[#allocation2 + $0x38] sm:$0xf] %vm1769, %v1750
      %1785 = vst.msk [vmem:[#allocation2 + $0x3c] sm:$0xf] %vm1769, %v1752
      %v1786 = vld [vmem:[%s1] sm:$0xf]
      %v1787 = vld [vmem:[#allocation2] sm:$0xf]
      %v1788 = vld [vmem:[#allocation2 + $0x4] sm:$0xf]
      %v1789 = vld [vmem:[#allocation2 + $0x8] sm:$0xf]
      %v1790 = vld [vmem:[#allocation2 + $0xc] sm:$0xf]
      %v1791 = vld [vmem:[#allocation2 + $0x10] sm:$0xf]
      %v1792 = vld [vmem:[#allocation2 + $0x14] sm:$0xf]
      %v1793 = vld [vmem:[#allocation2 + $0x18] sm:$0xf]
      %v1794 = vld [vmem:[#allocation2 + $0x1c] sm:$0xf]
      %v1795 = vld [vmem:[#allocation2 + $0x20] sm:$0xf]
      %v1796 = vld [vmem:[#allocation2 + $0x24] sm:$0xf]
      %v1797 = vld [vmem:[#allocation2 + $0x28] sm:$0xf]
      %v1798 = vld [vmem:[#allocation2 + $0x2c] sm:$0xf]
      %v1799 = vld [vmem:[#allocation2 + $0x30] sm:$0xf]
      %v1800 = vld [vmem:[#allocation2 + $0x34] sm:$0xf]
      %v1801 = vld [vmem:[#allocation2 + $0x38] sm:$0xf]
      %v1802 = vld [vmem:[#allocation2 + $0x3c] sm:$0xf]
      %v1803 = vld [vmem:[%s2] sm:$0xff]
      %1805 = vset.pattern.permute.xlu0 0
      %1806 = vperm.xlu0 %1805, %v1803
      %v1807 = vpop.permute.xlu0 %1806
      %v1825 = vunpack.c.l.b16 %v1787
      %v1826 = vunpack.c.l.b16 %v1788
      %v1827 = vunpack.c.l.b16 %v1789
      %v1828 = vunpack.c.l.b16 %v1790
      %v1829 = vunpack.c.l.b16 %v1791
      %v1830 = vunpack.c.l.b16 %v1792
      %v1831 = vunpack.c.l.b16 %v1793
      %v1832 = vunpack.c.l.b16 %v1794
      %v1833 = vunpack.c.l.b16 %v1795
      %v1834 = vunpack.c.l.b16 %v1796
      %v1835 = vunpack.c.l.b16 %v1797
      %v1836 = vunpack.c.l.b16 %v1798
      %v1837 = vunpack.c.l.b16 %v1799
      %v1838 = vunpack.c.l.b16 %v1800
      %v1839 = vunpack.c.l.b16 %v1801
      %v1840 = vunpack.c.l.b16 %v1802
      %v1841 = vpack.c.b16 %v1826, %v1825
      %v1842 = vpack.c.b16 %v1828, %v1827
      %v1843 = vpack.c.b16 %v1830, %v1829
      %v1844 = vpack.c.b16 %v1832, %v1831
      %v1845 = vpack.c.b16 %v1834, %v1833
      %v1846 = vpack.c.b16 %v1836, %v1835
      %v1847 = vpack.c.b16 %v1838, %v1837
      %v1848 = vpack.c.b16 %v1840, %v1839
      %vm1849 = vcmask 293888
      %v1851 = vsel %vm1849, %v1786, 0
      %v1854 = vsel %vm1849, %v1841, 0
      %v1857 = vsel %vm1849, %v1842, 0
      %v1860 = vsel %vm1849, %v1843, 0
      %v1863 = vsel %vm1849, %v1844, 0
      %v1866 = vsel %vm1849, %v1845, 0
      %v1869 = vsel %vm1849, %v1846, 0
      %v1872 = vsel %vm1849, %v1847, 0
      %v1875 = vsel %vm1849, %v1848, 0
      %1877 = vmatpush.bf16.xpose.msra.mxu0 %v1875
      %1878 = vmatpush.bf16.xpose.msra.mxu0 %v1872
      %1879 = vmatpush.bf16.xpose.msra.mxu0 %v1869
      %1880 = vmatpush.bf16.xpose.msra.mxu0 %v1866
      %1881 = vmatpush.bf16.xpose.msra.mxu0 %v1863
      %1882 = vmatpush.bf16.xpose.msra.mxu0 %v1860
      %1883 = vmatpush.bf16.xpose.msra.mxu0 %v1857
      %1884 = vmatpush.bf16.xpose.msra.mxu0 %v1854
      %1885 = vmatmul.bf16.gmra.mxu0 %v1851
      %v1886 = vpop.f32.mrf.mxu0
      %v1887 = vadd.f32 %v1807, %v1886
      %v1888 = vpop.f32.mrf.mxu0
      %1889 = vdwg.mxu0
      %1890 = vst [vmem:[%s190] sm:$0xff] %v1887
      %p1891 = scmp.lt.s32.totalorder %s18, 1
      %s1892 = scalar_select %p1891, %s18, 1
      %p1893 = scmp.lt.s32.totalorder %s19, 1
      %s1894 = scalar_select %p1893, %s19, 1
      %s1895 = smul.addr %s1892, 2
      %s1896 = sadd.s32 %s1894, %s1895
      %s1897 = smul.addr %s1896, 8
      %s1898 = scalar_lea.vmem %s3, %s1897
      // Predicated region
      $region33: #{depth_sep_conv2d_fused.1} parent=31 // pred_check
        %p1899 = pneg %p114
      $region34: #{depth_sep_conv2d_fused.1} parent=31 // pred_check_branch
        %1901 = sbr.rel (%p1899) target = $region36
      $region35: #{depth_sep_conv2d_fused.1} parent=31 // pred_region
        _
      $region36: #{depth_sep_conv2d_fused.1} parent=31 // pred_fallthru
        _
    $region32: #{depth_sep_conv2d_fused.1} parent=5 // pred_fallthru
      _
    %p1902 = scmp.le.s32.totalorder 2, %s9
    // Predicated region
    $region37: #{depth_sep_conv2d_fused.1} parent=5 // pred_check
      %p1903 = pneg %p1902
    $region38: #{depth_sep_conv2d_fused.1} parent=5 // pred_check_branch
      %1905 = sbr.rel (%p1903) target = $region40
    $region39: #{depth_sep_conv2d_fused.1} parent=5 // pred_region
      %s1906 = ssub.s32 %s9, 2
      // Predicated region
      $region41: #{depth_sep_conv2d_fused.1} parent=39 // pred_check
        %p1907 = pneg %p120
      $region42: #{depth_sep_conv2d_fused.1} parent=39 // pred_check_branch
        %1909 = sbr.rel (%p1907) target = $region44
      $region43: #{depth_sep_conv2d_fused.1} parent=39 // pred_region
        %p1910 = scmp.lt.s32.totalorder %s20, 1
        %s1911 = scalar_select %p1910, %s20, 1
        %p1912 = scmp.lt.s32.totalorder %s21, 1
        %s1913 = scalar_select %p1912, %s21, 1
        %s1914 = smul.addr %s1911, 2
        %s1915 = sadd.s32 %s1913, %s1914
        %s1916 = smul.addr %s1915, 8
        %s1917 = scalar_lea.vmem %s3, %s1916
      $region44: #{depth_sep_conv2d_fused.1} parent=39 // pred_fallthru
        _
    $region40: #{depth_sep_conv2d_fused.1} parent=5 // pred_fallthru
      _
  $region6: #{depth_sep_conv2d_fused.1} parent=0 // loop_footer
    %s13 = sadd.s32 1, %s9
  $region7: #{depth_sep_conv2d_fused.1} parent=0 // loop_footer_branch
    %8 = sbr.rel target = $region3
  $region8: #{depth_sep_conv2d_fused.1} parent=0 // loop_exit
    _

</llo_original>
